<compile_context>
chip_gen: v5e
topology: v5e:2x2
jax: 0.10.0
libtpu: 0.0.40
codegen_flags: <defaults>
</compile_context>

<pallas_src>
import functools

import jax
import jax.numpy as jnp
from jax.experimental import pallas as pl
from jax.experimental.pallas import tpu as pltpu

_LANE = 128


def _round_up(v, m):
    return ((v + m - 1) // m) * m


def _default_compute_dtype():
    """bf16 on v6e/v7x (VPU has a bf16 path); f32 on v5e and older / unknown."""
    try:
        dev = jax.devices()[0]
        if dev.platform != "tpu":
            return jnp.float32
        kind = dev.device_kind.lower()
    except Exception:  # defensive: never fail dtype selection
        return jnp.float32
    for old in ("v2", "v3", "v4", "v5"):
        if old in kind:
            return jnp.float32
    return jnp.bfloat16


def _pick_block_rows(rows_min, requested, align):
    """Rows (of 128 lanes each) processed per grid step.

    Big enough to amortize per-step pipeline overhead and weight splats, small
    enough to (a) keep the grid length >= 2 so both v7x TensorCores get work and
    (b) avoid padding a small batch up to a huge tile.  Always a multiple of
    `align` (8 for f32, 16 for packed bf16 sublanes).
    """
    br = min(_round_up(max(int(requested), align), align), 512)
    br = min(br, _round_up(rows_min, align))            # never exceed the batch
    if rows_min > align:                                # keep >= 2 grid steps
        br = min(br, max(align, _round_up((rows_min + 1) // 2, align)))
    steps = -(-rows_min // br)                          # equalize steps to bound
    return _round_up(-(-rows_min // steps), align)      # padding waste


def _make_mlp_kernel(compute_dtype):
    def _wrow(ref, i):
        # Weight/bias broadcast operand.
        #  f32 path: plain SMEM scalar (Mosaic splats it into the FMA) — proven path.
        #  bf16 path: splat the f32 scalar to a (1, 128) row and truncate once
        #  (hoisted); the row sublane-broadcasts against the (R, 128) batch slabs,
        #  avoiding any sub-32-bit scalar arithmetic.
        if compute_dtype == jnp.float32:
            return ref[i]
        return jnp.full((1, _LANE), ref[i], dtype=jnp.float32).astype(compute_dtype)

    def kernel(w1_ref, b1_ref, w2_ref, b2_ref, w3_ref, b3_ref, x_ref, o_ref):
        # Hoist every scalar weight/bias read (and its splat/cast) above the
        # unrolled FMA chains so the sld's / splats amortize over the whole block.
        w1 = [_wrow(w1_ref, i) for i in range(20)]    # W1[i, j] at i*10 + j
        b1 = [_wrow(b1_ref, j) for j in range(10)]
        w2 = [_wrow(w2_ref, i) for i in range(100)]   # W2[j, k] at j*10 + k
        b2 = [_wrow(b2_ref, k) for k in range(10)]
        w3 = [_wrow(w3_ref, j) for j in range(10)]    # W3[j, 0]
        b3 = b3_ref[0]                                 # final bias added in f32

        x0 = x_ref[0]   # (R, 128) in compute_dtype
        x1 = x_ref[1]

        # layer_1: 2 -> 10, + ReLU  (unrolled VPU FMAs, batch on lanes)
        h1 = [jnp.maximum(x0 * w1[j] + x1 * w1[10 + j] + b1[j], 0) for j in range(10)]

        # layer_2: 10 -> 10, + ReLU
        h2 = []
        for k in range(10):
            acc = h1[0] * w2[k]
            for j in range(1, 10):
                acc = acc + h1[j] * w2[j * 10 + k]
            h2.append(jnp.maximum(acc + b2[k], 0))

        # layer_3: 10 -> 1 (logits, no activation); upcast + add bias in f32.
        out = h2[0] * w3[0]
        for j in range(1, 10):
            out = out + h2[j] * w3[j]
        o_ref[...] = out.astype(jnp.float32) + b3

    return kernel


@functools.partial(jax.jit, static_argnames=("block_rows", "compute_dtype"))
def _forward_impl(x, params, block_rows, compute_dtype):
    w1, b1, w2, b2, w3, b3 = params   # (2,10),(10,),(10,10),(10,),(10,1),(1,)
    n = x.shape[0]

    align = 16 if compute_dtype == jnp.bfloat16 else 8
    rows_min = max(1, -(-n // _LANE))
    br = _pick_block_rows(rows_min, block_rows, align)
    rows = _round_up(max(rows_min, br), br)            # rows is a multiple of br
    n_pad = rows * _LANE

    # Single relayout pass (fused under jit): (N, 2) -> feature-major
    # (2, rows, 128) slabs in the compute dtype (halves input HBM on bf16).
    # TODO(synk): callers that can keep x feature-major (2, N) skip this pass.
    xt = jnp.pad(jnp.transpose(x).astype(compute_dtype), ((0, 0), (0, n_pad - n)))
    xs = xt.reshape(2, rows, _LANE)

    # ~151 weight/bias scalars flattened 1-D f32 for SMEM residency (1-D avoids
    # the 2-D SMEM (8,128) padding blowup); DMA'd once, live across the grid.
    flat = [a.reshape(-1).astype(jnp.float32)
            for a in (w1, b1, w2, b2, w3, b3)]

    smem_spec = pl.BlockSpec(memory_space=pltpu.MemorySpace.SMEM)

    out = pl.pallas_call(
        _make_mlp_kernel(compute_dtype),
        out_shape=jax.ShapeDtypeStruct((rows, _LANE), jnp.float32),
        grid=(rows // br,),
        in_specs=[smem_spec] * 6
        + [pl.BlockSpec((2, br, _LANE), lambda i: (0, i, 0))],
        out_specs=pl.BlockSpec((br, _LANE), lambda i: (i, 0)),
        compiler_params=pltpu.CompilerParams(
            dimension_semantics=("parallel",)   # v7x: steps split across both TCs
        ),
    )(*flat, xs)

    # Lane-dense (rows, 128) slab back to PyTorch's (N, 1).
    return out.reshape(n_pad)[:n].reshape(n, 1)


def circle_model_v2_forward(x, params, *, block_rows=256, compute_dtype=None):
    """Fused CircleModelV2 forward.  x: (N, 2) float32 -> (N, 1) float32 logits."""
    if compute_dtype is None:
        compute_dtype = _default_compute_dtype()
    return _forward_impl(x, params, block_rows, compute_dtype)


def init_params(key):
    """nn.Linear-style init; weights stored as (in, out), biases as (out,)."""
    keys = jax.random.split(key, 6)

    def linear(kw, kb, fan_in, fan_out):
        bound = 1.0 / jnp.sqrt(jnp.float32(fan_in))
        w = jax.random.uniform(
            kw, (fan_in, fan_out), jnp.float32, minval=-bound, maxval=bound
        )
        b = jax.random.uniform(
            kb, (fan_out,), jnp.float32, minval=-bound, maxval=bound
        )
        return w, b

    w1, b1 = linear(keys[0], keys[1], 2, 10)
    w2, b2 = linear(keys[2], keys[3], 10, 10)
    w3, b3 = linear(keys[4], keys[5], 10, 1)
    return (w1, b1, w2, b2, w3, b3)


def _reference(x, params):
    w1, b1, w2, b2, w3, b3 = params
    h1 = jnp.maximum(x @ w1 + b1, 0.0)
    h2 = jnp.maximum(h1 @ w2 + b2, 0.0)
    return h2 @ w3 + b3


if __name__ == "__main__":
    key = jax.random.PRNGKey(0)
    k_params, k_x1, k_x2 = jax.random.split(key, 3)
    params = init_params(k_params)

    cdt = _default_compute_dtype()
    # bf16 compute (v6e/v7x) needs looser tolerances vs the f32 reference.
    if cdt == jnp.bfloat16:
        atol, rtol = 1.5e-1, 5e-2
    else:
        atol, rtol = 1e-4, 1e-4

    # Small demo batch of 2-D points (like the "circles" dataset).
    x_small = jax.random.normal(k_x1, (8, 2), jnp.float32)
    out_small = jax.block_until_ready(circle_model_v2_forward(x_small, params))
    assert out_small.shape == (8, 1)
    assert jnp.allclose(out_small, _reference(x_small, params), atol=atol, rtol=rtol)

    # Larger, non-multiple-of-tile batch to exercise the padded multi-step grid
    # (adaptive block picking keeps the grid length >= 2 here).
    x_big = jax.random.normal(k_x2, (2500, 2), jnp.float32)
    out_big = jax.block_until_ready(circle_model_v2_forward(x_big, params))
    assert out_big.shape == (2500, 1)
    assert jnp.allclose(out_big, _reference(x_big, params), atol=atol, rtol=rtol)

    print("KERNEL_OK")
</pallas_src>

<mosaic_0001>
module attributes {stable_mosaic.version = 11 : i64} {
  func.func @kernel(%arg0: i32, %arg1: memref<20xf32, #tpu.memory_space<smem>>, %arg2: memref<10xf32, #tpu.memory_space<smem>>, %arg3: memref<100xf32, #tpu.memory_space<smem>>, %arg4: memref<10xf32, #tpu.memory_space<smem>>, %arg5: memref<10xf32, #tpu.memory_space<smem>>, %arg6: memref<1xf32, #tpu.memory_space<smem>>, %arg7: memref<2x8x128xf32, #tpu.memory_space<vmem>>, %arg8: memref<8x128xf32, #tpu.memory_space<vmem>>) attributes {dimension_semantics = [#tpu.dimension_semantics<parallel>], iteration_bounds = array<i64: 1>, scalar_prefetch = 0 : i64, scratch_operands = 0 : i64, tpu.core_type = #tpu.core_type<tc>, window_params = [{transform_indices = @transform_0, window_bounds = array<i64: 20>}, {transform_indices = @transform_1, window_bounds = array<i64: 10>}, {transform_indices = @transform_2, window_bounds = array<i64: 100>}, {transform_indices = @transform_3, window_bounds = array<i64: 10>}, {transform_indices = @transform_4, window_bounds = array<i64: 10>}, {transform_indices = @transform_5, window_bounds = array<i64: 1>}, {transform_indices = @transform_6, window_bounds = array<i64: 2, 8, 128>}, {transform_indices = @transform_7, window_bounds = array<i64: 8, 128>}]} {
    %c0 = arith.constant 0 : index
    %0 = memref.load %arg1[%c0] : memref<20xf32, #tpu.memory_space<smem>>
    %c1 = arith.constant 1 : index
    %1 = memref.load %arg1[%c1] : memref<20xf32, #tpu.memory_space<smem>>
    %c2 = arith.constant 2 : index
    %2 = memref.load %arg1[%c2] : memref<20xf32, #tpu.memory_space<smem>>
    %c3 = arith.constant 3 : index
    %3 = memref.load %arg1[%c3] : memref<20xf32, #tpu.memory_space<smem>>
    %c4 = arith.constant 4 : index
    %4 = memref.load %arg1[%c4] : memref<20xf32, #tpu.memory_space<smem>>
    %c5 = arith.constant 5 : index
    %5 = memref.load %arg1[%c5] : memref<20xf32, #tpu.memory_space<smem>>
    %c6 = arith.constant 6 : index
    %6 = memref.load %arg1[%c6] : memref<20xf32, #tpu.memory_space<smem>>
    %c7 = arith.constant 7 : index
    %7 = memref.load %arg1[%c7] : memref<20xf32, #tpu.memory_space<smem>>
    %c8 = arith.constant 8 : index
    %8 = memref.load %arg1[%c8] : memref<20xf32, #tpu.memory_space<smem>>
    %c9 = arith.constant 9 : index
    %9 = memref.load %arg1[%c9] : memref<20xf32, #tpu.memory_space<smem>>
    %c10 = arith.constant 10 : index
    %10 = memref.load %arg1[%c10] : memref<20xf32, #tpu.memory_space<smem>>
    %c11 = arith.constant 11 : index
    %11 = memref.load %arg1[%c11] : memref<20xf32, #tpu.memory_space<smem>>
    %c12 = arith.constant 12 : index
    %12 = memref.load %arg1[%c12] : memref<20xf32, #tpu.memory_space<smem>>
    %c13 = arith.constant 13 : index
    %13 = memref.load %arg1[%c13] : memref<20xf32, #tpu.memory_space<smem>>
    %c14 = arith.constant 14 : index
    %14 = memref.load %arg1[%c14] : memref<20xf32, #tpu.memory_space<smem>>
    %c15 = arith.constant 15 : index
    %15 = memref.load %arg1[%c15] : memref<20xf32, #tpu.memory_space<smem>>
    %c16 = arith.constant 16 : index
    %16 = memref.load %arg1[%c16] : memref<20xf32, #tpu.memory_space<smem>>
    %c17 = arith.constant 17 : index
    %17 = memref.load %arg1[%c17] : memref<20xf32, #tpu.memory_space<smem>>
    %c18 = arith.constant 18 : index
    %18 = memref.load %arg1[%c18] : memref<20xf32, #tpu.memory_space<smem>>
    %c19 = arith.constant 19 : index
    %19 = memref.load %arg1[%c19] : memref<20xf32, #tpu.memory_space<smem>>
    %c0_0 = arith.constant 0 : index
    %20 = memref.load %arg2[%c0_0] : memref<10xf32, #tpu.memory_space<smem>>
    %c1_1 = arith.constant 1 : index
    %21 = memref.load %arg2[%c1_1] : memref<10xf32, #tpu.memory_space<smem>>
    %c2_2 = arith.constant 2 : index
    %22 = memref.load %arg2[%c2_2] : memref<10xf32, #tpu.memory_space<smem>>
    %c3_3 = arith.constant 3 : index
    %23 = memref.load %arg2[%c3_3] : memref<10xf32, #tpu.memory_space<smem>>
    %c4_4 = arith.constant 4 : index
    %24 = memref.load %arg2[%c4_4] : memref<10xf32, #tpu.memory_space<smem>>
    %c5_5 = arith.constant 5 : index
    %25 = memref.load %arg2[%c5_5] : memref<10xf32, #tpu.memory_space<smem>>
    %c6_6 = arith.constant 6 : index
    %26 = memref.load %arg2[%c6_6] : memref<10xf32, #tpu.memory_space<smem>>
    %c7_7 = arith.constant 7 : index
    %27 = memref.load %arg2[%c7_7] : memref<10xf32, #tpu.memory_space<smem>>
    %c8_8 = arith.constant 8 : index
    %28 = memref.load %arg2[%c8_8] : memref<10xf32, #tpu.memory_space<smem>>
    %c9_9 = arith.constant 9 : index
    %29 = memref.load %arg2[%c9_9] : memref<10xf32, #tpu.memory_space<smem>>
    %c0_10 = arith.constant 0 : index
    %30 = memref.load %arg3[%c0_10] : memref<100xf32, #tpu.memory_space<smem>>
    %c1_11 = arith.constant 1 : index
    %31 = memref.load %arg3[%c1_11] : memref<100xf32, #tpu.memory_space<smem>>
    %c2_12 = arith.constant 2 : index
    %32 = memref.load %arg3[%c2_12] : memref<100xf32, #tpu.memory_space<smem>>
    %c3_13 = arith.constant 3 : index
    %33 = memref.load %arg3[%c3_13] : memref<100xf32, #tpu.memory_space<smem>>
    %c4_14 = arith.constant 4 : index
    %34 = memref.load %arg3[%c4_14] : memref<100xf32, #tpu.memory_space<smem>>
    %c5_15 = arith.constant 5 : index
    %35 = memref.load %arg3[%c5_15] : memref<100xf32, #tpu.memory_space<smem>>
    %c6_16 = arith.constant 6 : index
    %36 = memref.load %arg3[%c6_16] : memref<100xf32, #tpu.memory_space<smem>>
    %c7_17 = arith.constant 7 : index
    %37 = memref.load %arg3[%c7_17] : memref<100xf32, #tpu.memory_space<smem>>
    %c8_18 = arith.constant 8 : index
    %38 = memref.load %arg3[%c8_18] : memref<100xf32, #tpu.memory_space<smem>>
    %c9_19 = arith.constant 9 : index
    %39 = memref.load %arg3[%c9_19] : memref<100xf32, #tpu.memory_space<smem>>
    %c10_20 = arith.constant 10 : index
    %40 = memref.load %arg3[%c10_20] : memref<100xf32, #tpu.memory_space<smem>>
    %c11_21 = arith.constant 11 : index
    %41 = memref.load %arg3[%c11_21] : memref<100xf32, #tpu.memory_space<smem>>
    %c12_22 = arith.constant 12 : index
    %42 = memref.load %arg3[%c12_22] : memref<100xf32, #tpu.memory_space<smem>>
    %c13_23 = arith.constant 13 : index
    %43 = memref.load %arg3[%c13_23] : memref<100xf32, #tpu.memory_space<smem>>
    %c14_24 = arith.constant 14 : index
    %44 = memref.load %arg3[%c14_24] : memref<100xf32, #tpu.memory_space<smem>>
    %c15_25 = arith.constant 15 : index
    %45 = memref.load %arg3[%c15_25] : memref<100xf32, #tpu.memory_space<smem>>
    %c16_26 = arith.constant 16 : index
    %46 = memref.load %arg3[%c16_26] : memref<100xf32, #tpu.memory_space<smem>>
    %c17_27 = arith.constant 17 : index
    %47 = memref.load %arg3[%c17_27] : memref<100xf32, #tpu.memory_space<smem>>
    %c18_28 = arith.constant 18 : index
    %48 = memref.load %arg3[%c18_28] : memref<100xf32, #tpu.memory_space<smem>>
    %c19_29 = arith.constant 19 : index
    %49 = memref.load %arg3[%c19_29] : memref<100xf32, #tpu.memory_space<smem>>
    %c20 = arith.constant 20 : index
    %50 = memref.load %arg3[%c20] : memref<100xf32, #tpu.memory_space<smem>>
    %c21 = arith.constant 21 : index
    %51 = memref.load %arg3[%c21] : memref<100xf32, #tpu.memory_space<smem>>
    %c22 = arith.constant 22 : index
    %52 = memref.load %arg3[%c22] : memref<100xf32, #tpu.memory_space<smem>>
    %c23 = arith.constant 23 : index
    %53 = memref.load %arg3[%c23] : memref<100xf32, #tpu.memory_space<smem>>
    %c24 = arith.constant 24 : index
    %54 = memref.load %arg3[%c24] : memref<100xf32, #tpu.memory_space<smem>>
    %c25 = arith.constant 25 : index
    %55 = memref.load %arg3[%c25] : memref<100xf32, #tpu.memory_space<smem>>
    %c26 = arith.constant 26 : index
    %56 = memref.load %arg3[%c26] : memref<100xf32, #tpu.memory_space<smem>>
    %c27 = arith.constant 27 : index
    %57 = memref.load %arg3[%c27] : memref<100xf32, #tpu.memory_space<smem>>
    %c28 = arith.constant 28 : index
    %58 = memref.load %arg3[%c28] : memref<100xf32, #tpu.memory_space<smem>>
    %c29 = arith.constant 29 : index
    %59 = memref.load %arg3[%c29] : memref<100xf32, #tpu.memory_space<smem>>
    %c30 = arith.constant 30 : index
    %60 = memref.load %arg3[%c30] : memref<100xf32, #tpu.memory_space<smem>>
    %c31 = arith.constant 31 : index
    %61 = memref.load %arg3[%c31] : memref<100xf32, #tpu.memory_space<smem>>
    %c32 = arith.constant 32 : index
    %62 = memref.load %arg3[%c32] : memref<100xf32, #tpu.memory_space<smem>>
    %c33 = arith.constant 33 : index
    %63 = memref.load %arg3[%c33] : memref<100xf32, #tpu.memory_space<smem>>
    %c34 = arith.constant 34 : index
    %64 = memref.load %arg3[%c34] : memref<100xf32, #tpu.memory_space<smem>>
    %c35 = arith.constant 35 : index
    %65 = memref.load %arg3[%c35] : memref<100xf32, #tpu.memory_space<smem>>
    %c36 = arith.constant 36 : index
    %66 = memref.load %arg3[%c36] : memref<100xf32, #tpu.memory_space<smem>>
    %c37 = arith.constant 37 : index
    %67 = memref.load %arg3[%c37] : memref<100xf32, #tpu.memory_space<smem>>
    %c38 = arith.constant 38 : index
    %68 = memref.load %arg3[%c38] : memref<100xf32, #tpu.memory_space<smem>>
    %c39 = arith.constant 39 : index
    %69 = memref.load %arg3[%c39] : memref<100xf32, #tpu.memory_space<smem>>
    %c40 = arith.constant 40 : index
    %70 = memref.load %arg3[%c40] : memref<100xf32, #tpu.memory_space<smem>>
    %c41 = arith.constant 41 : index
    %71 = memref.load %arg3[%c41] : memref<100xf32, #tpu.memory_space<smem>>
    %c42 = arith.constant 42 : index
    %72 = memref.load %arg3[%c42] : memref<100xf32, #tpu.memory_space<smem>>
    %c43 = arith.constant 43 : index
    %73 = memref.load %arg3[%c43] : memref<100xf32, #tpu.memory_space<smem>>
    %c44 = arith.constant 44 : index
    %74 = memref.load %arg3[%c44] : memref<100xf32, #tpu.memory_space<smem>>
    %c45 = arith.constant 45 : index
    %75 = memref.load %arg3[%c45] : memref<100xf32, #tpu.memory_space<smem>>
    %c46 = arith.constant 46 : index
    %76 = memref.load %arg3[%c46] : memref<100xf32, #tpu.memory_space<smem>>
    %c47 = arith.constant 47 : index
    %77 = memref.load %arg3[%c47] : memref<100xf32, #tpu.memory_space<smem>>
    %c48 = arith.constant 48 : index
    %78 = memref.load %arg3[%c48] : memref<100xf32, #tpu.memory_space<smem>>
    %c49 = arith.constant 49 : index
    %79 = memref.load %arg3[%c49] : memref<100xf32, #tpu.memory_space<smem>>
    %c50 = arith.constant 50 : index
    %80 = memref.load %arg3[%c50] : memref<100xf32, #tpu.memory_space<smem>>
    %c51 = arith.constant 51 : index
    %81 = memref.load %arg3[%c51] : memref<100xf32, #tpu.memory_space<smem>>
    %c52 = arith.constant 52 : index
    %82 = memref.load %arg3[%c52] : memref<100xf32, #tpu.memory_space<smem>>
    %c53 = arith.constant 53 : index
    %83 = memref.load %arg3[%c53] : memref<100xf32, #tpu.memory_space<smem>>
    %c54 = arith.constant 54 : index
    %84 = memref.load %arg3[%c54] : memref<100xf32, #tpu.memory_space<smem>>
    %c55 = arith.constant 55 : index
    %85 = memref.load %arg3[%c55] : memref<100xf32, #tpu.memory_space<smem>>
    %c56 = arith.constant 56 : index
    %86 = memref.load %arg3[%c56] : memref<100xf32, #tpu.memory_space<smem>>
    %c57 = arith.constant 57 : index
    %87 = memref.load %arg3[%c57] : memref<100xf32, #tpu.memory_space<smem>>
    %c58 = arith.constant 58 : index
    %88 = memref.load %arg3[%c58] : memref<100xf32, #tpu.memory_space<smem>>
    %c59 = arith.constant 59 : index
    %89 = memref.load %arg3[%c59] : memref<100xf32, #tpu.memory_space<smem>>
    %c60 = arith.constant 60 : index
    %90 = memref.load %arg3[%c60] : memref<100xf32, #tpu.memory_space<smem>>
    %c61 = arith.constant 61 : index
    %91 = memref.load %arg3[%c61] : memref<100xf32, #tpu.memory_space<smem>>
    %c62 = arith.constant 62 : index
    %92 = memref.load %arg3[%c62] : memref<100xf32, #tpu.memory_space<smem>>
    %c63 = arith.constant 63 : index
    %93 = memref.load %arg3[%c63] : memref<100xf32, #tpu.memory_space<smem>>
    %c64 = arith.constant 64 : index
    %94 = memref.load %arg3[%c64] : memref<100xf32, #tpu.memory_space<smem>>
    %c65 = arith.constant 65 : index
    %95 = memref.load %arg3[%c65] : memref<100xf32, #tpu.memory_space<smem>>
    %c66 = arith.constant 66 : index
    %96 = memref.load %arg3[%c66] : memref<100xf32, #tpu.memory_space<smem>>
    %c67 = arith.constant 67 : index
    %97 = memref.load %arg3[%c67] : memref<100xf32, #tpu.memory_space<smem>>
    %c68 = arith.constant 68 : index
    %98 = memref.load %arg3[%c68] : memref<100xf32, #tpu.memory_space<smem>>
    %c69 = arith.constant 69 : index
    %99 = memref.load %arg3[%c69] : memref<100xf32, #tpu.memory_space<smem>>
    %c70 = arith.constant 70 : index
    %100 = memref.load %arg3[%c70] : memref<100xf32, #tpu.memory_space<smem>>
    %c71 = arith.constant 71 : index
    %101 = memref.load %arg3[%c71] : memref<100xf32, #tpu.memory_space<smem>>
    %c72 = arith.constant 72 : index
    %102 = memref.load %arg3[%c72] : memref<100xf32, #tpu.memory_space<smem>>
    %c73 = arith.constant 73 : index
    %103 = memref.load %arg3[%c73] : memref<100xf32, #tpu.memory_space<smem>>
    %c74 = arith.constant 74 : index
    %104 = memref.load %arg3[%c74] : memref<100xf32, #tpu.memory_space<smem>>
    %c75 = arith.constant 75 : index
    %105 = memref.load %arg3[%c75] : memref<100xf32, #tpu.memory_space<smem>>
    %c76 = arith.constant 76 : index
    %106 = memref.load %arg3[%c76] : memref<100xf32, #tpu.memory_space<smem>>
    %c77 = arith.constant 77 : index
    %107 = memref.load %arg3[%c77] : memref<100xf32, #tpu.memory_space<smem>>
    %c78 = arith.constant 78 : index
    %108 = memref.load %arg3[%c78] : memref<100xf32, #tpu.memory_space<smem>>
    %c79 = arith.constant 79 : index
    %109 = memref.load %arg3[%c79] : memref<100xf32, #tpu.memory_space<smem>>
    %c80 = arith.constant 80 : index
    %110 = memref.load %arg3[%c80] : memref<100xf32, #tpu.memory_space<smem>>
    %c81 = arith.constant 81 : index
    %111 = memref.load %arg3[%c81] : memref<100xf32, #tpu.memory_space<smem>>
    %c82 = arith.constant 82 : index
    %112 = memref.load %arg3[%c82] : memref<100xf32, #tpu.memory_space<smem>>
    %c83 = arith.constant 83 : index
    %113 = memref.load %arg3[%c83] : memref<100xf32, #tpu.memory_space<smem>>
    %c84 = arith.constant 84 : index
    %114 = memref.load %arg3[%c84] : memref<100xf32, #tpu.memory_space<smem>>
    %c85 = arith.constant 85 : index
    %115 = memref.load %arg3[%c85] : memref<100xf32, #tpu.memory_space<smem>>
    %c86 = arith.constant 86 : index
    %116 = memref.load %arg3[%c86] : memref<100xf32, #tpu.memory_space<smem>>
    %c87 = arith.constant 87 : index
    %117 = memref.load %arg3[%c87] : memref<100xf32, #tpu.memory_space<smem>>
    %c88 = arith.constant 88 : index
    %118 = memref.load %arg3[%c88] : memref<100xf32, #tpu.memory_space<smem>>
    %c89 = arith.constant 89 : index
    %119 = memref.load %arg3[%c89] : memref<100xf32, #tpu.memory_space<smem>>
    %c90 = arith.constant 90 : index
    %120 = memref.load %arg3[%c90] : memref<100xf32, #tpu.memory_space<smem>>
    %c91 = arith.constant 91 : index
    %121 = memref.load %arg3[%c91] : memref<100xf32, #tpu.memory_space<smem>>
    %c92 = arith.constant 92 : index
    %122 = memref.load %arg3[%c92] : memref<100xf32, #tpu.memory_space<smem>>
    %c93 = arith.constant 93 : index
    %123 = memref.load %arg3[%c93] : memref<100xf32, #tpu.memory_space<smem>>
    %c94 = arith.constant 94 : index
    %124 = memref.load %arg3[%c94] : memref<100xf32, #tpu.memory_space<smem>>
    %c95 = arith.constant 95 : index
    %125 = memref.load %arg3[%c95] : memref<100xf32, #tpu.memory_space<smem>>
    %c96 = arith.constant 96 : index
    %126 = memref.load %arg3[%c96] : memref<100xf32, #tpu.memory_space<smem>>
    %c97 = arith.constant 97 : index
    %127 = memref.load %arg3[%c97] : memref<100xf32, #tpu.memory_space<smem>>
    %c98 = arith.constant 98 : index
    %128 = memref.load %arg3[%c98] : memref<100xf32, #tpu.memory_space<smem>>
    %c99 = arith.constant 99 : index
    %129 = memref.load %arg3[%c99] : memref<100xf32, #tpu.memory_space<smem>>
    %c0_30 = arith.constant 0 : index
    %130 = memref.load %arg4[%c0_30] : memref<10xf32, #tpu.memory_space<smem>>
    %c1_31 = arith.constant 1 : index
    %131 = memref.load %arg4[%c1_31] : memref<10xf32, #tpu.memory_space<smem>>
    %c2_32 = arith.constant 2 : index
    %132 = memref.load %arg4[%c2_32] : memref<10xf32, #tpu.memory_space<smem>>
    %c3_33 = arith.constant 3 : index
    %133 = memref.load %arg4[%c3_33] : memref<10xf32, #tpu.memory_space<smem>>
    %c4_34 = arith.constant 4 : index
    %134 = memref.load %arg4[%c4_34] : memref<10xf32, #tpu.memory_space<smem>>
    %c5_35 = arith.constant 5 : index
    %135 = memref.load %arg4[%c5_35] : memref<10xf32, #tpu.memory_space<smem>>
    %c6_36 = arith.constant 6 : index
    %136 = memref.load %arg4[%c6_36] : memref<10xf32, #tpu.memory_space<smem>>
    %c7_37 = arith.constant 7 : index
    %137 = memref.load %arg4[%c7_37] : memref<10xf32, #tpu.memory_space<smem>>
    %c8_38 = arith.constant 8 : index
    %138 = memref.load %arg4[%c8_38] : memref<10xf32, #tpu.memory_space<smem>>
    %c9_39 = arith.constant 9 : index
    %139 = memref.load %arg4[%c9_39] : memref<10xf32, #tpu.memory_space<smem>>
    %c0_40 = arith.constant 0 : index
    %140 = memref.load %arg5[%c0_40] : memref<10xf32, #tpu.memory_space<smem>>
    %c1_41 = arith.constant 1 : index
    %141 = memref.load %arg5[%c1_41] : memref<10xf32, #tpu.memory_space<smem>>
    %c2_42 = arith.constant 2 : index
    %142 = memref.load %arg5[%c2_42] : memref<10xf32, #tpu.memory_space<smem>>
    %c3_43 = arith.constant 3 : index
    %143 = memref.load %arg5[%c3_43] : memref<10xf32, #tpu.memory_space<smem>>
    %c4_44 = arith.constant 4 : index
    %144 = memref.load %arg5[%c4_44] : memref<10xf32, #tpu.memory_space<smem>>
    %c5_45 = arith.constant 5 : index
    %145 = memref.load %arg5[%c5_45] : memref<10xf32, #tpu.memory_space<smem>>
    %c6_46 = arith.constant 6 : index
    %146 = memref.load %arg5[%c6_46] : memref<10xf32, #tpu.memory_space<smem>>
    %c7_47 = arith.constant 7 : index
    %147 = memref.load %arg5[%c7_47] : memref<10xf32, #tpu.memory_space<smem>>
    %c8_48 = arith.constant 8 : index
    %148 = memref.load %arg5[%c8_48] : memref<10xf32, #tpu.memory_space<smem>>
    %c9_49 = arith.constant 9 : index
    %149 = memref.load %arg5[%c9_49] : memref<10xf32, #tpu.memory_space<smem>>
    %c0_50 = arith.constant 0 : index
    %150 = memref.load %arg6[%c0_50] : memref<1xf32, #tpu.memory_space<smem>>
    %c0_51 = arith.constant 0 : index
    %c0_52 = arith.constant 0 : index
    %c0_53 = arith.constant 0 : index
    %151 = vector.load %arg7[%c0_51, %c0_52, %c0_53] : memref<2x8x128xf32, #tpu.memory_space<vmem>>, vector<1x8x128xf32>
    %152 = vector.shape_cast %151 : vector<1x8x128xf32> to vector<8x128xf32>
    %c1_54 = arith.constant 1 : index
    %c0_55 = arith.constant 0 : index
    %c0_56 = arith.constant 0 : index
    %153 = vector.load %arg7[%c1_54, %c0_55, %c0_56] : memref<2x8x128xf32, #tpu.memory_space<vmem>>, vector<1x8x128xf32>
    %154 = vector.shape_cast %153 : vector<1x8x128xf32> to vector<8x128xf32>
    %155 = vector.broadcast %0 : f32 to vector<8x128xf32>
    %156 = arith.mulf %152, %155 : vector<8x128xf32>
    %157 = vector.broadcast %10 : f32 to vector<8x128xf32>
    %158 = arith.mulf %154, %157 : vector<8x128xf32>
    %159 = arith.addf %156, %158 : vector<8x128xf32>
    %160 = vector.broadcast %20 : f32 to vector<8x128xf32>
    %161 = arith.addf %159, %160 : vector<8x128xf32>
    %cst = arith.constant 0.000000e+00 : f32
    %162 = vector.broadcast %cst : f32 to vector<8x128xf32>
    %163 = arith.maximumf %161, %162 : vector<8x128xf32>
    %164 = vector.broadcast %1 : f32 to vector<8x128xf32>
    %165 = arith.mulf %152, %164 : vector<8x128xf32>
    %166 = vector.broadcast %11 : f32 to vector<8x128xf32>
    %167 = arith.mulf %154, %166 : vector<8x128xf32>
    %168 = arith.addf %165, %167 : vector<8x128xf32>
    %169 = vector.broadcast %21 : f32 to vector<8x128xf32>
    %170 = arith.addf %168, %169 : vector<8x128xf32>
    %cst_57 = arith.constant 0.000000e+00 : f32
    %171 = vector.broadcast %cst_57 : f32 to vector<8x128xf32>
    %172 = arith.maximumf %170, %171 : vector<8x128xf32>
    %173 = vector.broadcast %2 : f32 to vector<8x128xf32>
    %174 = arith.mulf %152, %173 : vector<8x128xf32>
    %175 = vector.broadcast %12 : f32 to vector<8x128xf32>
    %176 = arith.mulf %154, %175 : vector<8x128xf32>
    %177 = arith.addf %174, %176 : vector<8x128xf32>
    %178 = vector.broadcast %22 : f32 to vector<8x128xf32>
    %179 = arith.addf %177, %178 : vector<8x128xf32>
    %cst_58 = arith.constant 0.000000e+00 : f32
    %180 = vector.broadcast %cst_58 : f32 to vector<8x128xf32>
    %181 = arith.maximumf %179, %180 : vector<8x128xf32>
    %182 = vector.broadcast %3 : f32 to vector<8x128xf32>
    %183 = arith.mulf %152, %182 : vector<8x128xf32>
    %184 = vector.broadcast %13 : f32 to vector<8x128xf32>
    %185 = arith.mulf %154, %184 : vector<8x128xf32>
    %186 = arith.addf %183, %185 : vector<8x128xf32>
    %187 = vector.broadcast %23 : f32 to vector<8x128xf32>
    %188 = arith.addf %186, %187 : vector<8x128xf32>
    %cst_59 = arith.constant 0.000000e+00 : f32
    %189 = vector.broadcast %cst_59 : f32 to vector<8x128xf32>
    %190 = arith.maximumf %188, %189 : vector<8x128xf32>
    %191 = vector.broadcast %4 : f32 to vector<8x128xf32>
    %192 = arith.mulf %152, %191 : vector<8x128xf32>
    %193 = vector.broadcast %14 : f32 to vector<8x128xf32>
    %194 = arith.mulf %154, %193 : vector<8x128xf32>
    %195 = arith.addf %192, %194 : vector<8x128xf32>
    %196 = vector.broadcast %24 : f32 to vector<8x128xf32>
    %197 = arith.addf %195, %196 : vector<8x128xf32>
    %cst_60 = arith.constant 0.000000e+00 : f32
    %198 = vector.broadcast %cst_60 : f32 to vector<8x128xf32>
    %199 = arith.maximumf %197, %198 : vector<8x128xf32>
    %200 = vector.broadcast %5 : f32 to vector<8x128xf32>
    %201 = arith.mulf %152, %200 : vector<8x128xf32>
    %202 = vector.broadcast %15 : f32 to vector<8x128xf32>
    %203 = arith.mulf %154, %202 : vector<8x128xf32>
    %204 = arith.addf %201, %203 : vector<8x128xf32>
    %205 = vector.broadcast %25 : f32 to vector<8x128xf32>
    %206 = arith.addf %204, %205 : vector<8x128xf32>
    %cst_61 = arith.constant 0.000000e+00 : f32
    %207 = vector.broadcast %cst_61 : f32 to vector<8x128xf32>
    %208 = arith.maximumf %206, %207 : vector<8x128xf32>
    %209 = vector.broadcast %6 : f32 to vector<8x128xf32>
    %210 = arith.mulf %152, %209 : vector<8x128xf32>
    %211 = vector.broadcast %16 : f32 to vector<8x128xf32>
    %212 = arith.mulf %154, %211 : vector<8x128xf32>
    %213 = arith.addf %210, %212 : vector<8x128xf32>
    %214 = vector.broadcast %26 : f32 to vector<8x128xf32>
    %215 = arith.addf %213, %214 : vector<8x128xf32>
    %cst_62 = arith.constant 0.000000e+00 : f32
    %216 = vector.broadcast %cst_62 : f32 to vector<8x128xf32>
    %217 = arith.maximumf %215, %216 : vector<8x128xf32>
    %218 = vector.broadcast %7 : f32 to vector<8x128xf32>
    %219 = arith.mulf %152, %218 : vector<8x128xf32>
    %220 = vector.broadcast %17 : f32 to vector<8x128xf32>
    %221 = arith.mulf %154, %220 : vector<8x128xf32>
    %222 = arith.addf %219, %221 : vector<8x128xf32>
    %223 = vector.broadcast %27 : f32 to vector<8x128xf32>
    %224 = arith.addf %222, %223 : vector<8x128xf32>
    %cst_63 = arith.constant 0.000000e+00 : f32
    %225 = vector.broadcast %cst_63 : f32 to vector<8x128xf32>
    %226 = arith.maximumf %224, %225 : vector<8x128xf32>
    %227 = vector.broadcast %8 : f32 to vector<8x128xf32>
    %228 = arith.mulf %152, %227 : vector<8x128xf32>
    %229 = vector.broadcast %18 : f32 to vector<8x128xf32>
    %230 = arith.mulf %154, %229 : vector<8x128xf32>
    %231 = arith.addf %228, %230 : vector<8x128xf32>
    %232 = vector.broadcast %28 : f32 to vector<8x128xf32>
    %233 = arith.addf %231, %232 : vector<8x128xf32>
    %cst_64 = arith.constant 0.000000e+00 : f32
    %234 = vector.broadcast %cst_64 : f32 to vector<8x128xf32>
    %235 = arith.maximumf %233, %234 : vector<8x128xf32>
    %236 = vector.broadcast %9 : f32 to vector<8x128xf32>
    %237 = arith.mulf %152, %236 : vector<8x128xf32>
    %238 = vector.broadcast %19 : f32 to vector<8x128xf32>
    %239 = arith.mulf %154, %238 : vector<8x128xf32>
    %240 = arith.addf %237, %239 : vector<8x128xf32>
    %241 = vector.broadcast %29 : f32 to vector<8x128xf32>
    %242 = arith.addf %240, %241 : vector<8x128xf32>
    %cst_65 = arith.constant 0.000000e+00 : f32
    %243 = vector.broadcast %cst_65 : f32 to vector<8x128xf32>
    %244 = arith.maximumf %242, %243 : vector<8x128xf32>
    %245 = vector.broadcast %30 : f32 to vector<8x128xf32>
    %246 = arith.mulf %163, %245 : vector<8x128xf32>
    %247 = vector.broadcast %40 : f32 to vector<8x128xf32>
    %248 = arith.mulf %172, %247 : vector<8x128xf32>
    %249 = arith.addf %246, %248 : vector<8x128xf32>
    %250 = vector.broadcast %50 : f32 to vector<8x128xf32>
    %251 = arith.mulf %181, %250 : vector<8x128xf32>
    %252 = arith.addf %249, %251 : vector<8x128xf32>
    %253 = vector.broadcast %60 : f32 to vector<8x128xf32>
    %254 = arith.mulf %190, %253 : vector<8x128xf32>
    %255 = arith.addf %252, %254 : vector<8x128xf32>
    %256 = vector.broadcast %70 : f32 to vector<8x128xf32>
    %257 = arith.mulf %199, %256 : vector<8x128xf32>
    %258 = arith.addf %255, %257 : vector<8x128xf32>
    %259 = vector.broadcast %80 : f32 to vector<8x128xf32>
    %260 = arith.mulf %208, %259 : vector<8x128xf32>
    %261 = arith.addf %258, %260 : vector<8x128xf32>
    %262 = vector.broadcast %90 : f32 to vector<8x128xf32>
    %263 = arith.mulf %217, %262 : vector<8x128xf32>
    %264 = arith.addf %261, %263 : vector<8x128xf32>
    %265 = vector.broadcast %100 : f32 to vector<8x128xf32>
    %266 = arith.mulf %226, %265 : vector<8x128xf32>
    %267 = arith.addf %264, %266 : vector<8x128xf32>
    %268 = vector.broadcast %110 : f32 to vector<8x128xf32>
    %269 = arith.mulf %235, %268 : vector<8x128xf32>
    %270 = arith.addf %267, %269 : vector<8x128xf32>
    %271 = vector.broadcast %120 : f32 to vector<8x128xf32>
    %272 = arith.mulf %244, %271 : vector<8x128xf32>
    %273 = arith.addf %270, %272 : vector<8x128xf32>
    %274 = vector.broadcast %130 : f32 to vector<8x128xf32>
    %275 = arith.addf %273, %274 : vector<8x128xf32>
    %cst_66 = arith.constant 0.000000e+00 : f32
    %276 = vector.broadcast %cst_66 : f32 to vector<8x128xf32>
    %277 = arith.maximumf %275, %276 : vector<8x128xf32>
    %278 = vector.broadcast %31 : f32 to vector<8x128xf32>
    %279 = arith.mulf %163, %278 : vector<8x128xf32>
    %280 = vector.broadcast %41 : f32 to vector<8x128xf32>
    %281 = arith.mulf %172, %280 : vector<8x128xf32>
    %282 = arith.addf %279, %281 : vector<8x128xf32>
    %283 = vector.broadcast %51 : f32 to vector<8x128xf32>
    %284 = arith.mulf %181, %283 : vector<8x128xf32>
    %285 = arith.addf %282, %284 : vector<8x128xf32>
    %286 = vector.broadcast %61 : f32 to vector<8x128xf32>
    %287 = arith.mulf %190, %286 : vector<8x128xf32>
    %288 = arith.addf %285, %287 : vector<8x128xf32>
    %289 = vector.broadcast %71 : f32 to vector<8x128xf32>
    %290 = arith.mulf %199, %289 : vector<8x128xf32>
    %291 = arith.addf %288, %290 : vector<8x128xf32>
    %292 = vector.broadcast %81 : f32 to vector<8x128xf32>
    %293 = arith.mulf %208, %292 : vector<8x128xf32>
    %294 = arith.addf %291, %293 : vector<8x128xf32>
    %295 = vector.broadcast %91 : f32 to vector<8x128xf32>
    %296 = arith.mulf %217, %295 : vector<8x128xf32>
    %297 = arith.addf %294, %296 : vector<8x128xf32>
    %298 = vector.broadcast %101 : f32 to vector<8x128xf32>
    %299 = arith.mulf %226, %298 : vector<8x128xf32>
    %300 = arith.addf %297, %299 : vector<8x128xf32>
    %301 = vector.broadcast %111 : f32 to vector<8x128xf32>
    %302 = arith.mulf %235, %301 : vector<8x128xf32>
    %303 = arith.addf %300, %302 : vector<8x128xf32>
    %304 = vector.broadcast %121 : f32 to vector<8x128xf32>
    %305 = arith.mulf %244, %304 : vector<8x128xf32>
    %306 = arith.addf %303, %305 : vector<8x128xf32>
    %307 = vector.broadcast %131 : f32 to vector<8x128xf32>
    %308 = arith.addf %306, %307 : vector<8x128xf32>
    %cst_67 = arith.constant 0.000000e+00 : f32
    %309 = vector.broadcast %cst_67 : f32 to vector<8x128xf32>
    %310 = arith.maximumf %308, %309 : vector<8x128xf32>
    %311 = vector.broadcast %32 : f32 to vector<8x128xf32>
    %312 = arith.mulf %163, %311 : vector<8x128xf32>
    %313 = vector.broadcast %42 : f32 to vector<8x128xf32>
    %314 = arith.mulf %172, %313 : vector<8x128xf32>
    %315 = arith.addf %312, %314 : vector<8x128xf32>
    %316 = vector.broadcast %52 : f32 to vector<8x128xf32>
    %317 = arith.mulf %181, %316 : vector<8x128xf32>
    %318 = arith.addf %315, %317 : vector<8x128xf32>
    %319 = vector.broadcast %62 : f32 to vector<8x128xf32>
    %320 = arith.mulf %190, %319 : vector<8x128xf32>
    %321 = arith.addf %318, %320 : vector<8x128xf32>
    %322 = vector.broadcast %72 : f32 to vector<8x128xf32>
    %323 = arith.mulf %199, %322 : vector<8x128xf32>
    %324 = arith.addf %321, %323 : vector<8x128xf32>
    %325 = vector.broadcast %82 : f32 to vector<8x128xf32>
    %326 = arith.mulf %208, %325 : vector<8x128xf32>
    %327 = arith.addf %324, %326 : vector<8x128xf32>
    %328 = vector.broadcast %92 : f32 to vector<8x128xf32>
    %329 = arith.mulf %217, %328 : vector<8x128xf32>
    %330 = arith.addf %327, %329 : vector<8x128xf32>
    %331 = vector.broadcast %102 : f32 to vector<8x128xf32>
    %332 = arith.mulf %226, %331 : vector<8x128xf32>
    %333 = arith.addf %330, %332 : vector<8x128xf32>
    %334 = vector.broadcast %112 : f32 to vector<8x128xf32>
    %335 = arith.mulf %235, %334 : vector<8x128xf32>
    %336 = arith.addf %333, %335 : vector<8x128xf32>
    %337 = vector.broadcast %122 : f32 to vector<8x128xf32>
    %338 = arith.mulf %244, %337 : vector<8x128xf32>
    %339 = arith.addf %336, %338 : vector<8x128xf32>
    %340 = vector.broadcast %132 : f32 to vector<8x128xf32>
    %341 = arith.addf %339, %340 : vector<8x128xf32>
    %cst_68 = arith.constant 0.000000e+00 : f32
    %342 = vector.broadcast %cst_68 : f32 to vector<8x128xf32>
    %343 = arith.maximumf %341, %342 : vector<8x128xf32>
    %344 = vector.broadcast %33 : f32 to vector<8x128xf32>
    %345 = arith.mulf %163, %344 : vector<8x128xf32>
    %346 = vector.broadcast %43 : f32 to vector<8x128xf32>
    %347 = arith.mulf %172, %346 : vector<8x128xf32>
    %348 = arith.addf %345, %347 : vector<8x128xf32>
    %349 = vector.broadcast %53 : f32 to vector<8x128xf32>
    %350 = arith.mulf %181, %349 : vector<8x128xf32>
    %351 = arith.addf %348, %350 : vector<8x128xf32>
    %352 = vector.broadcast %63 : f32 to vector<8x128xf32>
    %353 = arith.mulf %190, %352 : vector<8x128xf32>
    %354 = arith.addf %351, %353 : vector<8x128xf32>
    %355 = vector.broadcast %73 : f32 to vector<8x128xf32>
    %356 = arith.mulf %199, %355 : vector<8x128xf32>
    %357 = arith.addf %354, %356 : vector<8x128xf32>
    %358 = vector.broadcast %83 : f32 to vector<8x128xf32>
    %359 = arith.mulf %208, %358 : vector<8x128xf32>
    %360 = arith.addf %357, %359 : vector<8x128xf32>
    %361 = vector.broadcast %93 : f32 to vector<8x128xf32>
    %362 = arith.mulf %217, %361 : vector<8x128xf32>
    %363 = arith.addf %360, %362 : vector<8x128xf32>
    %364 = vector.broadcast %103 : f32 to vector<8x128xf32>
    %365 = arith.mulf %226, %364 : vector<8x128xf32>
    %366 = arith.addf %363, %365 : vector<8x128xf32>
    %367 = vector.broadcast %113 : f32 to vector<8x128xf32>
    %368 = arith.mulf %235, %367 : vector<8x128xf32>
    %369 = arith.addf %366, %368 : vector<8x128xf32>
    %370 = vector.broadcast %123 : f32 to vector<8x128xf32>
    %371 = arith.mulf %244, %370 : vector<8x128xf32>
    %372 = arith.addf %369, %371 : vector<8x128xf32>
    %373 = vector.broadcast %133 : f32 to vector<8x128xf32>
    %374 = arith.addf %372, %373 : vector<8x128xf32>
    %cst_69 = arith.constant 0.000000e+00 : f32
    %375 = vector.broadcast %cst_69 : f32 to vector<8x128xf32>
    %376 = arith.maximumf %374, %375 : vector<8x128xf32>
    %377 = vector.broadcast %34 : f32 to vector<8x128xf32>
    %378 = arith.mulf %163, %377 : vector<8x128xf32>
    %379 = vector.broadcast %44 : f32 to vector<8x128xf32>
    %380 = arith.mulf %172, %379 : vector<8x128xf32>
    %381 = arith.addf %378, %380 : vector<8x128xf32>
    %382 = vector.broadcast %54 : f32 to vector<8x128xf32>
    %383 = arith.mulf %181, %382 : vector<8x128xf32>
    %384 = arith.addf %381, %383 : vector<8x128xf32>
    %385 = vector.broadcast %64 : f32 to vector<8x128xf32>
    %386 = arith.mulf %190, %385 : vector<8x128xf32>
    %387 = arith.addf %384, %386 : vector<8x128xf32>
    %388 = vector.broadcast %74 : f32 to vector<8x128xf32>
    %389 = arith.mulf %199, %388 : vector<8x128xf32>
    %390 = arith.addf %387, %389 : vector<8x128xf32>
    %391 = vector.broadcast %84 : f32 to vector<8x128xf32>
    %392 = arith.mulf %208, %391 : vector<8x128xf32>
    %393 = arith.addf %390, %392 : vector<8x128xf32>
    %394 = vector.broadcast %94 : f32 to vector<8x128xf32>
    %395 = arith.mulf %217, %394 : vector<8x128xf32>
    %396 = arith.addf %393, %395 : vector<8x128xf32>
    %397 = vector.broadcast %104 : f32 to vector<8x128xf32>
    %398 = arith.mulf %226, %397 : vector<8x128xf32>
    %399 = arith.addf %396, %398 : vector<8x128xf32>
    %400 = vector.broadcast %114 : f32 to vector<8x128xf32>
    %401 = arith.mulf %235, %400 : vector<8x128xf32>
    %402 = arith.addf %399, %401 : vector<8x128xf32>
    %403 = vector.broadcast %124 : f32 to vector<8x128xf32>
    %404 = arith.mulf %244, %403 : vector<8x128xf32>
    %405 = arith.addf %402, %404 : vector<8x128xf32>
    %406 = vector.broadcast %134 : f32 to vector<8x128xf32>
    %407 = arith.addf %405, %406 : vector<8x128xf32>
    %cst_70 = arith.constant 0.000000e+00 : f32
    %408 = vector.broadcast %cst_70 : f32 to vector<8x128xf32>
    %409 = arith.maximumf %407, %408 : vector<8x128xf32>
    %410 = vector.broadcast %35 : f32 to vector<8x128xf32>
    %411 = arith.mulf %163, %410 : vector<8x128xf32>
    %412 = vector.broadcast %45 : f32 to vector<8x128xf32>
    %413 = arith.mulf %172, %412 : vector<8x128xf32>
    %414 = arith.addf %411, %413 : vector<8x128xf32>
    %415 = vector.broadcast %55 : f32 to vector<8x128xf32>
    %416 = arith.mulf %181, %415 : vector<8x128xf32>
    %417 = arith.addf %414, %416 : vector<8x128xf32>
    %418 = vector.broadcast %65 : f32 to vector<8x128xf32>
    %419 = arith.mulf %190, %418 : vector<8x128xf32>
    %420 = arith.addf %417, %419 : vector<8x128xf32>
    %421 = vector.broadcast %75 : f32 to vector<8x128xf32>
    %422 = arith.mulf %199, %421 : vector<8x128xf32>
    %423 = arith.addf %420, %422 : vector<8x128xf32>
    %424 = vector.broadcast %85 : f32 to vector<8x128xf32>
    %425 = arith.mulf %208, %424 : vector<8x128xf32>
    %426 = arith.addf %423, %425 : vector<8x128xf32>
    %427 = vector.broadcast %95 : f32 to vector<8x128xf32>
    %428 = arith.mulf %217, %427 : vector<8x128xf32>
    %429 = arith.addf %426, %428 : vector<8x128xf32>
    %430 = vector.broadcast %105 : f32 to vector<8x128xf32>
    %431 = arith.mulf %226, %430 : vector<8x128xf32>
    %432 = arith.addf %429, %431 : vector<8x128xf32>
    %433 = vector.broadcast %115 : f32 to vector<8x128xf32>
    %434 = arith.mulf %235, %433 : vector<8x128xf32>
    %435 = arith.addf %432, %434 : vector<8x128xf32>
    %436 = vector.broadcast %125 : f32 to vector<8x128xf32>
    %437 = arith.mulf %244, %436 : vector<8x128xf32>
    %438 = arith.addf %435, %437 : vector<8x128xf32>
    %439 = vector.broadcast %135 : f32 to vector<8x128xf32>
    %440 = arith.addf %438, %439 : vector<8x128xf32>
    %cst_71 = arith.constant 0.000000e+00 : f32
    %441 = vector.broadcast %cst_71 : f32 to vector<8x128xf32>
    %442 = arith.maximumf %440, %441 : vector<8x128xf32>
    %443 = vector.broadcast %36 : f32 to vector<8x128xf32>
    %444 = arith.mulf %163, %443 : vector<8x128xf32>
    %445 = vector.broadcast %46 : f32 to vector<8x128xf32>
    %446 = arith.mulf %172, %445 : vector<8x128xf32>
    %447 = arith.addf %444, %446 : vector<8x128xf32>
    %448 = vector.broadcast %56 : f32 to vector<8x128xf32>
    %449 = arith.mulf %181, %448 : vector<8x128xf32>
    %450 = arith.addf %447, %449 : vector<8x128xf32>
    %451 = vector.broadcast %66 : f32 to vector<8x128xf32>
    %452 = arith.mulf %190, %451 : vector<8x128xf32>
    %453 = arith.addf %450, %452 : vector<8x128xf32>
    %454 = vector.broadcast %76 : f32 to vector<8x128xf32>
    %455 = arith.mulf %199, %454 : vector<8x128xf32>
    %456 = arith.addf %453, %455 : vector<8x128xf32>
    %457 = vector.broadcast %86 : f32 to vector<8x128xf32>
    %458 = arith.mulf %208, %457 : vector<8x128xf32>
    %459 = arith.addf %456, %458 : vector<8x128xf32>
    %460 = vector.broadcast %96 : f32 to vector<8x128xf32>
    %461 = arith.mulf %217, %460 : vector<8x128xf32>
    %462 = arith.addf %459, %461 : vector<8x128xf32>
    %463 = vector.broadcast %106 : f32 to vector<8x128xf32>
    %464 = arith.mulf %226, %463 : vector<8x128xf32>
    %465 = arith.addf %462, %464 : vector<8x128xf32>
    %466 = vector.broadcast %116 : f32 to vector<8x128xf32>
    %467 = arith.mulf %235, %466 : vector<8x128xf32>
    %468 = arith.addf %465, %467 : vector<8x128xf32>
    %469 = vector.broadcast %126 : f32 to vector<8x128xf32>
    %470 = arith.mulf %244, %469 : vector<8x128xf32>
    %471 = arith.addf %468, %470 : vector<8x128xf32>
    %472 = vector.broadcast %136 : f32 to vector<8x128xf32>
    %473 = arith.addf %471, %472 : vector<8x128xf32>
    %cst_72 = arith.constant 0.000000e+00 : f32
    %474 = vector.broadcast %cst_72 : f32 to vector<8x128xf32>
    %475 = arith.maximumf %473, %474 : vector<8x128xf32>
    %476 = vector.broadcast %37 : f32 to vector<8x128xf32>
    %477 = arith.mulf %163, %476 : vector<8x128xf32>
    %478 = vector.broadcast %47 : f32 to vector<8x128xf32>
    %479 = arith.mulf %172, %478 : vector<8x128xf32>
    %480 = arith.addf %477, %479 : vector<8x128xf32>
    %481 = vector.broadcast %57 : f32 to vector<8x128xf32>
    %482 = arith.mulf %181, %481 : vector<8x128xf32>
    %483 = arith.addf %480, %482 : vector<8x128xf32>
    %484 = vector.broadcast %67 : f32 to vector<8x128xf32>
    %485 = arith.mulf %190, %484 : vector<8x128xf32>
    %486 = arith.addf %483, %485 : vector<8x128xf32>
    %487 = vector.broadcast %77 : f32 to vector<8x128xf32>
    %488 = arith.mulf %199, %487 : vector<8x128xf32>
    %489 = arith.addf %486, %488 : vector<8x128xf32>
    %490 = vector.broadcast %87 : f32 to vector<8x128xf32>
    %491 = arith.mulf %208, %490 : vector<8x128xf32>
    %492 = arith.addf %489, %491 : vector<8x128xf32>
    %493 = vector.broadcast %97 : f32 to vector<8x128xf32>
    %494 = arith.mulf %217, %493 : vector<8x128xf32>
    %495 = arith.addf %492, %494 : vector<8x128xf32>
    %496 = vector.broadcast %107 : f32 to vector<8x128xf32>
    %497 = arith.mulf %226, %496 : vector<8x128xf32>
    %498 = arith.addf %495, %497 : vector<8x128xf32>
    %499 = vector.broadcast %117 : f32 to vector<8x128xf32>
    %500 = arith.mulf %235, %499 : vector<8x128xf32>
    %501 = arith.addf %498, %500 : vector<8x128xf32>
    %502 = vector.broadcast %127 : f32 to vector<8x128xf32>
    %503 = arith.mulf %244, %502 : vector<8x128xf32>
    %504 = arith.addf %501, %503 : vector<8x128xf32>
    %505 = vector.broadcast %137 : f32 to vector<8x128xf32>
    %506 = arith.addf %504, %505 : vector<8x128xf32>
    %cst_73 = arith.constant 0.000000e+00 : f32
    %507 = vector.broadcast %cst_73 : f32 to vector<8x128xf32>
    %508 = arith.maximumf %506, %507 : vector<8x128xf32>
    %509 = vector.broadcast %38 : f32 to vector<8x128xf32>
    %510 = arith.mulf %163, %509 : vector<8x128xf32>
    %511 = vector.broadcast %48 : f32 to vector<8x128xf32>
    %512 = arith.mulf %172, %511 : vector<8x128xf32>
    %513 = arith.addf %510, %512 : vector<8x128xf32>
    %514 = vector.broadcast %58 : f32 to vector<8x128xf32>
    %515 = arith.mulf %181, %514 : vector<8x128xf32>
    %516 = arith.addf %513, %515 : vector<8x128xf32>
    %517 = vector.broadcast %68 : f32 to vector<8x128xf32>
    %518 = arith.mulf %190, %517 : vector<8x128xf32>
    %519 = arith.addf %516, %518 : vector<8x128xf32>
    %520 = vector.broadcast %78 : f32 to vector<8x128xf32>
    %521 = arith.mulf %199, %520 : vector<8x128xf32>
    %522 = arith.addf %519, %521 : vector<8x128xf32>
    %523 = vector.broadcast %88 : f32 to vector<8x128xf32>
    %524 = arith.mulf %208, %523 : vector<8x128xf32>
    %525 = arith.addf %522, %524 : vector<8x128xf32>
    %526 = vector.broadcast %98 : f32 to vector<8x128xf32>
    %527 = arith.mulf %217, %526 : vector<8x128xf32>
    %528 = arith.addf %525, %527 : vector<8x128xf32>
    %529 = vector.broadcast %108 : f32 to vector<8x128xf32>
    %530 = arith.mulf %226, %529 : vector<8x128xf32>
    %531 = arith.addf %528, %530 : vector<8x128xf32>
    %532 = vector.broadcast %118 : f32 to vector<8x128xf32>
    %533 = arith.mulf %235, %532 : vector<8x128xf32>
    %534 = arith.addf %531, %533 : vector<8x128xf32>
    %535 = vector.broadcast %128 : f32 to vector<8x128xf32>
    %536 = arith.mulf %244, %535 : vector<8x128xf32>
    %537 = arith.addf %534, %536 : vector<8x128xf32>
    %538 = vector.broadcast %138 : f32 to vector<8x128xf32>
    %539 = arith.addf %537, %538 : vector<8x128xf32>
    %cst_74 = arith.constant 0.000000e+00 : f32
    %540 = vector.broadcast %cst_74 : f32 to vector<8x128xf32>
    %541 = arith.maximumf %539, %540 : vector<8x128xf32>
    %542 = vector.broadcast %39 : f32 to vector<8x128xf32>
    %543 = arith.mulf %163, %542 : vector<8x128xf32>
    %544 = vector.broadcast %49 : f32 to vector<8x128xf32>
    %545 = arith.mulf %172, %544 : vector<8x128xf32>
    %546 = arith.addf %543, %545 : vector<8x128xf32>
    %547 = vector.broadcast %59 : f32 to vector<8x128xf32>
    %548 = arith.mulf %181, %547 : vector<8x128xf32>
    %549 = arith.addf %546, %548 : vector<8x128xf32>
    %550 = vector.broadcast %69 : f32 to vector<8x128xf32>
    %551 = arith.mulf %190, %550 : vector<8x128xf32>
    %552 = arith.addf %549, %551 : vector<8x128xf32>
    %553 = vector.broadcast %79 : f32 to vector<8x128xf32>
    %554 = arith.mulf %199, %553 : vector<8x128xf32>
    %555 = arith.addf %552, %554 : vector<8x128xf32>
    %556 = vector.broadcast %89 : f32 to vector<8x128xf32>
    %557 = arith.mulf %208, %556 : vector<8x128xf32>
    %558 = arith.addf %555, %557 : vector<8x128xf32>
    %559 = vector.broadcast %99 : f32 to vector<8x128xf32>
    %560 = arith.mulf %217, %559 : vector<8x128xf32>
    %561 = arith.addf %558, %560 : vector<8x128xf32>
    %562 = vector.broadcast %109 : f32 to vector<8x128xf32>
    %563 = arith.mulf %226, %562 : vector<8x128xf32>
    %564 = arith.addf %561, %563 : vector<8x128xf32>
    %565 = vector.broadcast %119 : f32 to vector<8x128xf32>
    %566 = arith.mulf %235, %565 : vector<8x128xf32>
    %567 = arith.addf %564, %566 : vector<8x128xf32>
    %568 = vector.broadcast %129 : f32 to vector<8x128xf32>
    %569 = arith.mulf %244, %568 : vector<8x128xf32>
    %570 = arith.addf %567, %569 : vector<8x128xf32>
    %571 = vector.broadcast %139 : f32 to vector<8x128xf32>
    %572 = arith.addf %570, %571 : vector<8x128xf32>
    %cst_75 = arith.constant 0.000000e+00 : f32
    %573 = vector.broadcast %cst_75 : f32 to vector<8x128xf32>
    %574 = arith.maximumf %572, %573 : vector<8x128xf32>
    %575 = vector.broadcast %140 : f32 to vector<8x128xf32>
    %576 = arith.mulf %277, %575 : vector<8x128xf32>
    %577 = vector.broadcast %141 : f32 to vector<8x128xf32>
    %578 = arith.mulf %310, %577 : vector<8x128xf32>
    %579 = arith.addf %576, %578 : vector<8x128xf32>
    %580 = vector.broadcast %142 : f32 to vector<8x128xf32>
    %581 = arith.mulf %343, %580 : vector<8x128xf32>
    %582 = arith.addf %579, %581 : vector<8x128xf32>
    %583 = vector.broadcast %143 : f32 to vector<8x128xf32>
    %584 = arith.mulf %376, %583 : vector<8x128xf32>
    %585 = arith.addf %582, %584 : vector<8x128xf32>
    %586 = vector.broadcast %144 : f32 to vector<8x128xf32>
    %587 = arith.mulf %409, %586 : vector<8x128xf32>
    %588 = arith.addf %585, %587 : vector<8x128xf32>
    %589 = vector.broadcast %145 : f32 to vector<8x128xf32>
    %590 = arith.mulf %442, %589 : vector<8x128xf32>
    %591 = arith.addf %588, %590 : vector<8x128xf32>
    %592 = vector.broadcast %146 : f32 to vector<8x128xf32>
    %593 = arith.mulf %475, %592 : vector<8x128xf32>
    %594 = arith.addf %591, %593 : vector<8x128xf32>
    %595 = vector.broadcast %147 : f32 to vector<8x128xf32>
    %596 = arith.mulf %508, %595 : vector<8x128xf32>
    %597 = arith.addf %594, %596 : vector<8x128xf32>
    %598 = vector.broadcast %148 : f32 to vector<8x128xf32>
    %599 = arith.mulf %541, %598 : vector<8x128xf32>
    %600 = arith.addf %597, %599 : vector<8x128xf32>
    %601 = vector.broadcast %149 : f32 to vector<8x128xf32>
    %602 = arith.mulf %574, %601 : vector<8x128xf32>
    %603 = arith.addf %600, %602 : vector<8x128xf32>
    %604 = vector.broadcast %150 : f32 to vector<8x128xf32>
    %605 = arith.addf %603, %604 : vector<8x128xf32>
    %c0_76 = arith.constant 0 : index
    %c0_77 = arith.constant 0 : index
    %606 = vector.load %arg8[%c0_76, %c0_77] : memref<8x128xf32, #tpu.memory_space<vmem>>, vector<8x128xf32>
    tpu.vector_store %arg8[%c0_76, %c0_77], %605 {strides = array<i32>} : memref<8x128xf32, #tpu.memory_space<vmem>>, vector<8x128xf32>,
    return
  }
  func.func @transform_0(%arg0: i32) -> i32 {
    %c0_i32 = arith.constant 0 : i32
    %c0_i32_0 = arith.constant 0 : i32
    return %c0_i32 : i32
  }
  func.func @transform_1(%arg0: i32) -> i32 {
    %c0_i32 = arith.constant 0 : i32
    %c0_i32_0 = arith.constant 0 : i32
    return %c0_i32 : i32
  }
  func.func @transform_2(%arg0: i32) -> i32 {
    %c0_i32 = arith.constant 0 : i32
    %c0_i32_0 = arith.constant 0 : i32
    return %c0_i32 : i32
  }
  func.func @transform_3(%arg0: i32) -> i32 {
    %c0_i32 = arith.constant 0 : i32
    %c0_i32_0 = arith.constant 0 : i32
    return %c0_i32 : i32
  }
  func.func @transform_4(%arg0: i32) -> i32 {
    %c0_i32 = arith.constant 0 : i32
    %c0_i32_0 = arith.constant 0 : i32
    return %c0_i32 : i32
  }
  func.func @transform_5(%arg0: i32) -> i32 {
    %c0_i32 = arith.constant 0 : i32
    %c0_i32_0 = arith.constant 0 : i32
    return %c0_i32 : i32
  }
  func.func @transform_6(%arg0: i32) -> (i32, i32, i32) {
    %c0_i32 = arith.constant 0 : i32
    %c0_i32_0 = arith.constant 0 : i32
    %c0_i32_1 = arith.constant 0 : i32
    return %c0_i32, %arg0, %c0_i32_0 : i32, i32, i32
  }
  func.func @transform_7(%arg0: i32) -> (i32, i32) {
    %c0_i32 = arith.constant 0 : i32
    %c0_i32_0 = arith.constant 0 : i32
    return %arg0, %c0_i32 : i32, i32
  }
}

</mosaic_0001>

<llo_original>
// kernel: _forward_impl.1
$region0: #{_forward_impl.1}
  #allocation0 [shape = 'u32[]', space=smem, size = 0x4, offset = 0x4, fixed_abs, tag = 'smem constant byte address 0x4 - core index']
  #allocation1 [shape = 'u32[72,128]{1,0:T(1,128)}', space=vmem, size = 0x9000, scoped, tag = 'internal scratch']
  #allocation2 [shape = 'f32[1]{0:T(128)S(6)}', space=smem, size = 0x200, scoped, tag = 'scoped memory for _forward_impl.1']
  %s0 = inlined_call_operand.vmem [shape: f32[20], index: 0, kind: input, shape index: {}]
  %s1 = inlined_call_operand.vmem [shape: f32[10], index: 1, kind: input, shape index: {}]
  %s2 = inlined_call_operand.vmem [shape: f32[100], index: 2, kind: input, shape index: {}]
  %s3 = inlined_call_operand.vmem [shape: f32[10], index: 3, kind: input, shape index: {}]
  %s4 = inlined_call_operand.vmem [shape: f32[10], index: 4, kind: input, shape index: {}]
  %s5 = inlined_call_operand.<no memory space> [shape: f32[1], index: 5, kind: input, shape index: {}]
  %s6 = inlined_call_operand.vmem [shape: f32[2,8,128], index: 6, kind: input, shape index: {}]
  %s7 = inlined_call_operand.vmem [shape: f32[8,128], index: 7, kind: output, shape index: {}]
  %s8 = sld [smem:[#allocation0]]
  $region58: #{_forward_impl.1} parent=0
    _
  %s10 = ssub.s32 1, %s8
  %s11 = scalar_select 0, %s10, %s8
  %12 = sst [smem:[#allocation2]] %s5
  $region1: #{_forward_impl.1} parent=0
    #allocation3 [shape = 'u8[512]{0}', space=smem, size = 0x200, scoped, tag = 'input window, operand 0, single buffered']
    #allocation4 [shape = 's32[1]{0}', space=sflag, size = 0x4, scoped, tag = 'scoped memory for _forward_impl.1']
    #allocation5 [shape = 'u8[512]{0}', space=smem, size = 0x200, scoped, tag = 'input window, operand 1, single buffered']
    #allocation6 [shape = 's32[1]{0}', space=sflag, size = 0x4, scoped, tag = 'scoped memory for _forward_impl.1']
    #allocation7 [shape = 'u8[512]{0}', space=smem, size = 0x200, scoped, tag = 'input window, operand 2, single buffered']
    #allocation8 [shape = 'u8[512]{0}', space=smem, size = 0x200, scoped, tag = 'input window, operand 3, single buffered']
    #allocation9 [shape = 's32[1]{0}', space=sflag, size = 0x4, scoped, tag = 'scoped memory for _forward_impl.1']
    #allocation10 [shape = 'u8[512]{0}', space=smem, size = 0x200, scoped, tag = 'input window, operand 4, single buffered']
    %13 = vsyncpa [#allocation4], 0
    %14 = vsyncpa [#allocation6], 0
    %15 = vsyncpa [#allocation9], 0
    // Predicated region
    $region2: #{_forward_impl.1} parent=1 // pred_check
      _
    $region3: #{_forward_impl.1} parent=1 // pred_check_branch
      %17 = sbr.rel (0) target = $region5
    $region4: #{_forward_impl.1} parent=1 // pred_region
      %19 = vsyncadd [#allocation4], 0
      %s21 = sshll.u32 %s0, 4
      %s22 = int_to_ptr.vmem [resolvable:$true] %s21
      %24 = dma.vmem_to_smem %s22, 16, [#allocation3], [#allocation4]
    $region5: #{_forward_impl.1} parent=1 // pred_fallthru
      _
    // Predicated region
    $region6: #{_forward_impl.1} parent=1 // pred_check
      _
    $region7: #{_forward_impl.1} parent=1 // pred_check_branch
      %26 = sbr.rel (0) target = $region9
    $region8: #{_forward_impl.1} parent=1 // pred_region
      %28 = vsyncadd [#allocation6], 0
      %s30 = sshll.u32 %s1, 4
      %s31 = int_to_ptr.vmem [resolvable:$true] %s30
      %33 = dma.vmem_to_smem %s31, 16, [#allocation5], [#allocation6]
    $region9: #{_forward_impl.1} parent=1 // pred_fallthru
      _
    // Predicated region
    $region10: #{_forward_impl.1} parent=1 // pred_check
      _
    $region11: #{_forward_impl.1} parent=1 // pred_check_branch
      %35 = sbr.rel (0) target = $region13
    $region12: #{_forward_impl.1} parent=1 // pred_region
      %37 = vsyncadd [#allocation6], 0
      %s39 = sshll.u32 %s2, 4
      %s40 = int_to_ptr.vmem [resolvable:$true] %s39
      %42 = dma.vmem_to_smem %s40, 16, [#allocation7], [#allocation6]
    $region13: #{_forward_impl.1} parent=1 // pred_fallthru
      _
    // Predicated region
    $region14: #{_forward_impl.1} parent=1 // pred_check
      _
    $region15: #{_forward_impl.1} parent=1 // pred_check_branch
      %44 = sbr.rel (0) target = $region17
    $region16: #{_forward_impl.1} parent=1 // pred_region
      %46 = vsyncadd [#allocation9], 0
      %s48 = sshll.u32 %s3, 4
      %s49 = int_to_ptr.vmem [resolvable:$true] %s48
      %51 = dma.vmem_to_smem %s49, 16, [#allocation8], [#allocation9]
    $region17: #{_forward_impl.1} parent=1 // pred_fallthru
      _
    // Predicated region
    $region18: #{_forward_impl.1} parent=1 // pred_check
      _
    $region19: #{_forward_impl.1} parent=1 // pred_check_branch
      %53 = sbr.rel (0) target = $region21
    $region20: #{_forward_impl.1} parent=1 // pred_region
      %55 = vsyncadd [#allocation9], 0
      %s57 = sshll.u32 %s4, 4
      %s58 = int_to_ptr.vmem [resolvable:$true] %s57
      %60 = dma.vmem_to_smem %s58, 16, [#allocation10], [#allocation9]
    $region21: #{_forward_impl.1} parent=1 // pred_fallthru
      _
    // Predicated region
    $region22: #{_forward_impl.1} parent=1 // pred_check
      _
    $region23: #{_forward_impl.1} parent=1 // pred_check_branch
      %62 = sbr.rel (0) target = $region25
    $region24: #{_forward_impl.1} parent=1 // pred_region
      _
    $region25: #{_forward_impl.1} parent=1 // pred_fallthru
      _
    // Predicated region
    $region26: #{_forward_impl.1} parent=1 // pred_check
      _
    $region27: #{_forward_impl.1} parent=1 // pred_check_branch
      %64 = sbr.rel (0) target = $region29
    $region28: #{_forward_impl.1} parent=1 // pred_region
      _
    $region29: #{_forward_impl.1} parent=1 // pred_fallthru
      _
    // Predicated region
    $region30: #{_forward_impl.1} parent=1 // pred_check
      _
    $region31: #{_forward_impl.1} parent=1 // pred_check_branch
      %66 = sbr.rel (0) target = $region33
    $region32: #{_forward_impl.1} parent=1 // pred_region
      %68 = dma.done [#allocation4], 16
    $region33: #{_forward_impl.1} parent=1 // pred_fallthru
      _
    // Predicated region
    $region34: #{_forward_impl.1} parent=1 // pred_check
      _
    $region35: #{_forward_impl.1} parent=1 // pred_check_branch
      %70 = sbr.rel (0) target = $region37
    $region36: #{_forward_impl.1} parent=1 // pred_region
      %72 = dma.done [#allocation6], 16
    $region37: #{_forward_impl.1} parent=1 // pred_fallthru
      _
    // Predicated region
    $region38: #{_forward_impl.1} parent=1 // pred_check
      _
    $region39: #{_forward_impl.1} parent=1 // pred_check_branch
      %74 = sbr.rel (0) target = $region41
    $region40: #{_forward_impl.1} parent=1 // pred_region
      %76 = dma.done [#allocation6], 16
    $region41: #{_forward_impl.1} parent=1 // pred_fallthru
      _
    // Predicated region
    $region42: #{_forward_impl.1} parent=1 // pred_check
      _
    $region43: #{_forward_impl.1} parent=1 // pred_check_branch
      %78 = sbr.rel (0) target = $region45
    $region44: #{_forward_impl.1} parent=1 // pred_region
      %80 = dma.done [#allocation9], 16
    $region45: #{_forward_impl.1} parent=1 // pred_fallthru
      _
    // Predicated region
    $region46: #{_forward_impl.1} parent=1 // pred_check
      _
    $region47: #{_forward_impl.1} parent=1 // pred_check_branch
      %82 = sbr.rel (0) target = $region49
    $region48: #{_forward_impl.1} parent=1 // pred_region
      %84 = dma.done [#allocation9], 16
    $region49: #{_forward_impl.1} parent=1 // pred_fallthru
      _
    %85 = sfence
    %s86 = sld [smem:[#allocation3]]
    %s87 = sld [smem:[#allocation3 + $0x1]]
    %s88 = sld [smem:[#allocation3 + $0x2]]
    %s89 = sld [smem:[#allocation3 + $0x3]]
    %s90 = sld [smem:[#allocation3 + $0x4]]
    %s91 = sld [smem:[#allocation3 + $0x5]]
    %s92 = sld [smem:[#allocation3 + $0x6]]
    %s93 = sld [smem:[#allocation3 + $0x7]]
    %s94 = sld [smem:[#allocation3 + $0x8]]
    %s95 = sld [smem:[#allocation3 + $0x9]]
    %s96 = sld [smem:[#allocation3 + $0xa]]
    %s97 = sld [smem:[#allocation3 + $0xb]]
    %s98 = sld [smem:[#allocation3 + $0xc]]
    %s99 = sld [smem:[#allocation3 + $0xd]]
    %s100 = sld [smem:[#allocation3 + $0xe]]
    %s101 = sld [smem:[#allocation3 + $0xf]]
    %s102 = sld [smem:[#allocation3 + $0x10]]
    %s103 = sld [smem:[#allocation3 + $0x11]]
    %s104 = sld [smem:[#allocation3 + $0x12]]
    %s105 = sld [smem:[#allocation3 + $0x13]]
    %s106 = sld [smem:[#allocation5]]
    %s107 = sld [smem:[#allocation5 + $0x1]]
    %s108 = sld [smem:[#allocation5 + $0x2]]
    %s109 = sld [smem:[#allocation5 + $0x3]]
    %s110 = sld [smem:[#allocation5 + $0x4]]
    %s111 = sld [smem:[#allocation5 + $0x5]]
    %s112 = sld [smem:[#allocation5 + $0x6]]
    %s113 = sld [smem:[#allocation5 + $0x7]]
    %s114 = sld [smem:[#allocation5 + $0x8]]
    %s115 = sld [smem:[#allocation5 + $0x9]]
    %s116 = sld [smem:[#allocation7]]
    %s117 = sld [smem:[#allocation7 + $0x1]]
    %s118 = sld [smem:[#allocation7 + $0x2]]
    %s119 = sld [smem:[#allocation7 + $0x3]]
    %s120 = sld [smem:[#allocation7 + $0x4]]
    %s121 = sld [smem:[#allocation7 + $0x5]]
    %s122 = sld [smem:[#allocation7 + $0x6]]
    %s123 = sld [smem:[#allocation7 + $0x7]]
    %s124 = sld [smem:[#allocation7 + $0x8]]
    %s125 = sld [smem:[#allocation7 + $0x9]]
    %s126 = sld [smem:[#allocation7 + $0xa]]
    %s127 = sld [smem:[#allocation7 + $0xb]]
    %s128 = sld [smem:[#allocation7 + $0xc]]
    %s129 = sld [smem:[#allocation7 + $0xd]]
    %s130 = sld [smem:[#allocation7 + $0xe]]
    %s131 = sld [smem:[#allocation7 + $0xf]]
    %s132 = sld [smem:[#allocation7 + $0x10]]
    %s133 = sld [smem:[#allocation7 + $0x11]]
    %s134 = sld [smem:[#allocation7 + $0x12]]
    %s135 = sld [smem:[#allocation7 + $0x13]]
    %s136 = sld [smem:[#allocation7 + $0x14]]
    %s137 = sld [smem:[#allocation7 + $0x15]]
    %s138 = sld [smem:[#allocation7 + $0x16]]
    %s139 = sld [smem:[#allocation7 + $0x17]]
    %s140 = sld [smem:[#allocation7 + $0x18]]
    %s141 = sld [smem:[#allocation7 + $0x19]]
    %s142 = sld [smem:[#allocation7 + $0x1a]]
    %s143 = sld [smem:[#allocation7 + $0x1b]]
    %s144 = sld [smem:[#allocation7 + $0x1c]]
    %s145 = sld [smem:[#allocation7 + $0x1d]]
    %s146 = sld [smem:[#allocation7 + $0x1e]]
    %s147 = sld [smem:[#allocation7 + $0x1f]]
    %s148 = sld [smem:[#allocation7 + $0x20]]
    %s149 = sld [smem:[#allocation7 + $0x21]]
    %s150 = sld [smem:[#allocation7 + $0x22]]
    %s151 = sld [smem:[#allocation7 + $0x23]]
    %s152 = sld [smem:[#allocation7 + $0x24]]
    %s153 = sld [smem:[#allocation7 + $0x25]]
    %s154 = sld [smem:[#allocation7 + $0x26]]
    %s155 = sld [smem:[#allocation7 + $0x27]]
    %s156 = sld [smem:[#allocation7 + $0x28]]
    %s157 = sld [smem:[#allocation7 + $0x29]]
    %s158 = sld [smem:[#allocation7 + $0x2a]]
    %s159 = sld [smem:[#allocation7 + $0x2b]]
    %s160 = sld [smem:[#allocation7 + $0x2c]]
    %s161 = sld [smem:[#allocation7 + $0x2d]]
    %s162 = sld [smem:[#allocation7 + $0x2e]]
    %s163 = sld [smem:[#allocation7 + $0x2f]]
    %s164 = sld [smem:[#allocation7 + $0x30]]
    %s165 = sld [smem:[#allocation7 + $0x31]]
    %s166 = sld [smem:[#allocation7 + $0x32]]
    %s167 = sld [smem:[#allocation7 + $0x33]]
    %s168 = sld [smem:[#allocation7 + $0x34]]
    %s169 = sld [smem:[#allocation7 + $0x35]]
    %s170 = sld [smem:[#allocation7 + $0x36]]
    %s171 = sld [smem:[#allocation7 + $0x37]]
    %s172 = sld [smem:[#allocation7 + $0x38]]
    %s173 = sld [smem:[#allocation7 + $0x39]]
    %s174 = sld [smem:[#allocation7 + $0x3a]]
    %s175 = sld [smem:[#allocation7 + $0x3b]]
    %s176 = sld [smem:[#allocation7 + $0x3c]]
    %s177 = sld [smem:[#allocation7 + $0x3d]]
    %s178 = sld [smem:[#allocation7 + $0x3e]]
    %s179 = sld [smem:[#allocation7 + $0x3f]]
    %s180 = sld [smem:[#allocation7 + $0x40]]
    %s181 = sld [smem:[#allocation7 + $0x41]]
    %s182 = sld [smem:[#allocation7 + $0x42]]
    %s183 = sld [smem:[#allocation7 + $0x43]]
    %s184 = sld [smem:[#allocation7 + $0x44]]
    %s185 = sld [smem:[#allocation7 + $0x45]]
    %s186 = sld [smem:[#allocation7 + $0x46]]
    %s187 = sld [smem:[#allocation7 + $0x47]]
    %s188 = sld [smem:[#allocation7 + $0x48]]
    %s189 = sld [smem:[#allocation7 + $0x49]]
    %s190 = sld [smem:[#allocation7 + $0x4a]]
    %s191 = sld [smem:[#allocation7 + $0x4b]]
    %s192 = sld [smem:[#allocation7 + $0x4c]]
    %s193 = sld [smem:[#allocation7 + $0x4d]]
    %s194 = sld [smem:[#allocation7 + $0x4e]]
    %s195 = sld [smem:[#allocation7 + $0x4f]]
    %s196 = sld [smem:[#allocation7 + $0x50]]
    %s197 = sld [smem:[#allocation7 + $0x51]]
    %s198 = sld [smem:[#allocation7 + $0x52]]
    %s199 = sld [smem:[#allocation7 + $0x53]]
    %s200 = sld [smem:[#allocation7 + $0x54]]
    %s201 = sld [smem:[#allocation7 + $0x55]]
    %s202 = sld [smem:[#allocation7 + $0x56]]
    %s203 = sld [smem:[#allocation7 + $0x57]]
    %s204 = sld [smem:[#allocation7 + $0x58]]
    %s205 = sld [smem:[#allocation7 + $0x59]]
    %s206 = sld [smem:[#allocation7 + $0x5a]]
    %s207 = sld [smem:[#allocation7 + $0x5b]]
    %s208 = sld [smem:[#allocation7 + $0x5c]]
    %s209 = sld [smem:[#allocation7 + $0x5d]]
    %s210 = sld [smem:[#allocation7 + $0x5e]]
    %s211 = sld [smem:[#allocation7 + $0x5f]]
    %s212 = sld [smem:[#allocation7 + $0x60]]
    %s213 = sld [smem:[#allocation7 + $0x61]]
    %s214 = sld [smem:[#allocation7 + $0x62]]
    %s215 = sld [smem:[#allocation7 + $0x63]]
    %s216 = sld [smem:[#allocation8]]
    %s217 = sld [smem:[#allocation8 + $0x1]]
    %s218 = sld [smem:[#allocation8 + $0x2]]
    %s219 = sld [smem:[#allocation8 + $0x3]]
    %s220 = sld [smem:[#allocation8 + $0x4]]
    %s221 = sld [smem:[#allocation8 + $0x5]]
    %s222 = sld [smem:[#allocation8 + $0x6]]
    %s223 = sld [smem:[#allocation8 + $0x7]]
    %s224 = sld [smem:[#allocation8 + $0x8]]
    %s225 = sld [smem:[#allocation8 + $0x9]]
    %s226 = sld [smem:[#allocation10]]
    %s227 = sld [smem:[#allocation10 + $0x1]]
    %s228 = sld [smem:[#allocation10 + $0x2]]
    %s229 = sld [smem:[#allocation10 + $0x3]]
    %s230 = sld [smem:[#allocation10 + $0x4]]
    %s231 = sld [smem:[#allocation10 + $0x5]]
    %s232 = sld [smem:[#allocation10 + $0x6]]
    %s233 = sld [smem:[#allocation10 + $0x7]]
    %s234 = sld [smem:[#allocation10 + $0x8]]
    %s235 = sld [smem:[#allocation10 + $0x9]]
    %s236 = sld [smem:[#allocation2]]
    %v237 = vld [vmem:[%s6] sm:$0xff]
    %s238 = scalar_lea.vmem %s6, 8
    %v239 = vld [vmem:[%s238] sm:$0xff]
    %v240 = vstv %s86
    %v241 = vmul.f32 %v237, %v240
    %v242 = vstv %s96
    %v243 = vmul.f32 %v239, %v242
    %v244 = vadd.f32 %v241, %v243
    %v245 = vstv %s106
    %v246 = vadd.f32 %v244, %v245
    %v247 = vmax.f32 %v246, 0.0
    %v248 = vstv %s87
    %v249 = vmul.f32 %v237, %v248
    %v250 = vstv %s97
    %v251 = vmul.f32 %v239, %v250
    %v252 = vadd.f32 %v249, %v251
    %v253 = vstv %s107
    %v254 = vadd.f32 %v252, %v253
    %v255 = vmax.f32 %v254, 0.0
    %v256 = vstv %s88
    %v257 = vmul.f32 %v237, %v256
    %v258 = vstv %s98
    %v259 = vmul.f32 %v239, %v258
    %v260 = vadd.f32 %v257, %v259
    %v261 = vstv %s108
    %v262 = vadd.f32 %v260, %v261
    %v263 = vmax.f32 %v262, 0.0
    %v264 = vstv %s89
    %v265 = vmul.f32 %v237, %v264
    %v266 = vstv %s99
    %v267 = vmul.f32 %v239, %v266
    %v268 = vadd.f32 %v265, %v267
    %v269 = vstv %s109
    %v270 = vadd.f32 %v268, %v269
    %v271 = vmax.f32 %v270, 0.0
    %v272 = vstv %s90
    %v273 = vmul.f32 %v237, %v272
    %v274 = vstv %s100
    %v275 = vmul.f32 %v239, %v274
    %v276 = vadd.f32 %v273, %v275
    %v277 = vstv %s110
    %v278 = vadd.f32 %v276, %v277
    %v279 = vmax.f32 %v278, 0.0
    %v280 = vstv %s91
    %v281 = vmul.f32 %v237, %v280
    %v282 = vstv %s101
    %v283 = vmul.f32 %v239, %v282
    %v284 = vadd.f32 %v281, %v283
    %v285 = vstv %s111
    %v286 = vadd.f32 %v284, %v285
    %v287 = vmax.f32 %v286, 0.0
    %v288 = vstv %s92
    %v289 = vmul.f32 %v237, %v288
    %v290 = vstv %s102
    %v291 = vmul.f32 %v239, %v290
    %v292 = vadd.f32 %v289, %v291
    %v293 = vstv %s112
    %v294 = vadd.f32 %v292, %v293
    %v295 = vmax.f32 %v294, 0.0
    %v296 = vstv %s93
    %v297 = vmul.f32 %v237, %v296
    %v298 = vstv %s103
    %v299 = vmul.f32 %v239, %v298
    %v300 = vadd.f32 %v297, %v299
    %v301 = vstv %s113
    %v302 = vadd.f32 %v300, %v301
    %v303 = vmax.f32 %v302, 0.0
    %v304 = vstv %s94
    %v305 = vmul.f32 %v237, %v304
    %v306 = vstv %s104
    %v307 = vmul.f32 %v239, %v306
    %v308 = vadd.f32 %v305, %v307
    %v309 = vstv %s114
    %v310 = vadd.f32 %v308, %v309
    %v311 = vmax.f32 %v310, 0.0
    %v312 = vstv %s95
    %v313 = vmul.f32 %v237, %v312
    %v314 = vstv %s105
    %v315 = vmul.f32 %v239, %v314
    %v316 = vadd.f32 %v313, %v315
    %v317 = vstv %s115
    %v318 = vadd.f32 %v316, %v317
    %v319 = vmax.f32 %v318, 0.0
    %v320 = vstv %s116
    %v321 = vmul.f32 %v247, %v320
    %v322 = vstv %s126
    %v323 = vmul.f32 %v255, %v322
    %v324 = vadd.f32 %v321, %v323
    %v325 = vstv %s136
    %v326 = vmul.f32 %v263, %v325
    %v327 = vadd.f32 %v324, %v326
    %v328 = vstv %s146
    %v329 = vmul.f32 %v271, %v328
    %v330 = vadd.f32 %v327, %v329
    %v331 = vstv %s156
    %v332 = vmul.f32 %v279, %v331
    %v333 = vadd.f32 %v330, %v332
    %v334 = vstv %s166
    %v335 = vmul.f32 %v287, %v334
    %v336 = vadd.f32 %v333, %v335
    %v337 = vstv %s176
    %v338 = vmul.f32 %v295, %v337
    %v339 = vadd.f32 %v336, %v338
    %v340 = vstv %s186
    %v341 = vmul.f32 %v303, %v340
    %v342 = vadd.f32 %v339, %v341
    %v343 = vstv %s196
    %v344 = vmul.f32 %v311, %v343
    %v345 = vadd.f32 %v342, %v344
    %v346 = vstv %s206
    %v347 = vmul.f32 %v319, %v346
    %v348 = vadd.f32 %v345, %v347
    %v349 = vstv %s216
    %v350 = vadd.f32 %v348, %v349
    %v351 = vmax.f32 %v350, 0.0
    %v352 = vstv %s117
    %v353 = vmul.f32 %v247, %v352
    %v354 = vstv %s127
    %v355 = vmul.f32 %v255, %v354
    %v356 = vadd.f32 %v353, %v355
    %v357 = vstv %s137
    %v358 = vmul.f32 %v263, %v357
    %v359 = vadd.f32 %v356, %v358
    %v360 = vstv %s147
    %v361 = vmul.f32 %v271, %v360
    %v362 = vadd.f32 %v359, %v361
    %v363 = vstv %s157
    %v364 = vmul.f32 %v279, %v363
    %v365 = vadd.f32 %v362, %v364
    %v366 = vstv %s167
    %v367 = vmul.f32 %v287, %v366
    %v368 = vadd.f32 %v365, %v367
    %v369 = vstv %s177
    %v370 = vmul.f32 %v295, %v369
    %v371 = vadd.f32 %v368, %v370
    %v372 = vstv %s187
    %v373 = vmul.f32 %v303, %v372
    %v374 = vadd.f32 %v371, %v373
    %v375 = vstv %s197
    %v376 = vmul.f32 %v311, %v375
    %v377 = vadd.f32 %v374, %v376
    %v378 = vstv %s207
    %v379 = vmul.f32 %v319, %v378
    %v380 = vadd.f32 %v377, %v379
    %v381 = vstv %s217
    %v382 = vadd.f32 %v380, %v381
    %v383 = vmax.f32 %v382, 0.0
    %v384 = vstv %s118
    %v385 = vmul.f32 %v247, %v384
    %v386 = vstv %s128
    %v387 = vmul.f32 %v255, %v386
    %v388 = vadd.f32 %v385, %v387
    %v389 = vstv %s138
    %v390 = vmul.f32 %v263, %v389
    %v391 = vadd.f32 %v388, %v390
    %v392 = vstv %s148
    %v393 = vmul.f32 %v271, %v392
    %v394 = vadd.f32 %v391, %v393
    %v395 = vstv %s158
    %v396 = vmul.f32 %v279, %v395
    %v397 = vadd.f32 %v394, %v396
    %v398 = vstv %s168
    %v399 = vmul.f32 %v287, %v398
    %v400 = vadd.f32 %v397, %v399
    %v401 = vstv %s178
    %v402 = vmul.f32 %v295, %v401
    %v403 = vadd.f32 %v400, %v402
    %v404 = vstv %s188
    %v405 = vmul.f32 %v303, %v404
    %v406 = vadd.f32 %v403, %v405
    %v407 = vstv %s198
    %v408 = vmul.f32 %v311, %v407
    %v409 = vadd.f32 %v406, %v408
    %v410 = vstv %s208
    %v411 = vmul.f32 %v319, %v410
    %v412 = vadd.f32 %v409, %v411
    %v413 = vstv %s218
    %v414 = vadd.f32 %v412, %v413
    %v415 = vmax.f32 %v414, 0.0
    %v416 = vstv %s119
    %v417 = vmul.f32 %v247, %v416
    %v418 = vstv %s129
    %v419 = vmul.f32 %v255, %v418
    %v420 = vadd.f32 %v417, %v419
    %v421 = vstv %s139
    %v422 = vmul.f32 %v263, %v421
    %v423 = vadd.f32 %v420, %v422
    %v424 = vstv %s149
    %v425 = vmul.f32 %v271, %v424
    %v426 = vadd.f32 %v423, %v425
    %v427 = vstv %s159
    %v428 = vmul.f32 %v279, %v427
    %v429 = vadd.f32 %v426, %v428
    %v430 = vstv %s169
    %v431 = vmul.f32 %v287, %v430
    %v432 = vadd.f32 %v429, %v431
    %v433 = vstv %s179
    %v434 = vmul.f32 %v295, %v433
    %v435 = vadd.f32 %v432, %v434
    %v436 = vstv %s189
    %v437 = vmul.f32 %v303, %v436
    %v438 = vadd.f32 %v435, %v437
    %v439 = vstv %s199
    %v440 = vmul.f32 %v311, %v439
    %v441 = vadd.f32 %v438, %v440
    %v442 = vstv %s209
    %v443 = vmul.f32 %v319, %v442
    %v444 = vadd.f32 %v441, %v443
    %v445 = vstv %s219
    %v446 = vadd.f32 %v444, %v445
    %v447 = vmax.f32 %v446, 0.0
    %v448 = vstv %s120
    %v449 = vmul.f32 %v247, %v448
    %v450 = vstv %s130
    %v451 = vmul.f32 %v255, %v450
    %v452 = vadd.f32 %v449, %v451
    %v453 = vstv %s140
    %v454 = vmul.f32 %v263, %v453
    %v455 = vadd.f32 %v452, %v454
    %v456 = vstv %s150
    %v457 = vmul.f32 %v271, %v456
    %v458 = vadd.f32 %v455, %v457
    %v459 = vstv %s160
    %v460 = vmul.f32 %v279, %v459
    %v461 = vadd.f32 %v458, %v460
    %v462 = vstv %s170
    %v463 = vmul.f32 %v287, %v462
    %v464 = vadd.f32 %v461, %v463
    %v465 = vstv %s180
    %v466 = vmul.f32 %v295, %v465
    %v467 = vadd.f32 %v464, %v466
    %v468 = vstv %s190
    %v469 = vmul.f32 %v303, %v468
    %v470 = vadd.f32 %v467, %v469
    %v471 = vstv %s200
    %v472 = vmul.f32 %v311, %v471
    %v473 = vadd.f32 %v470, %v472
    %v474 = vstv %s210
    %v475 = vmul.f32 %v319, %v474
    %v476 = vadd.f32 %v473, %v475
    %v477 = vstv %s220
    %v478 = vadd.f32 %v476, %v477
    %v479 = vmax.f32 %v478, 0.0
    %v480 = vstv %s121
    %v481 = vmul.f32 %v247, %v480
    %v482 = vstv %s131
    %v483 = vmul.f32 %v255, %v482
    %v484 = vadd.f32 %v481, %v483
    %v485 = vstv %s141
    %v486 = vmul.f32 %v263, %v485
    %v487 = vadd.f32 %v484, %v486
    %v488 = vstv %s151
    %v489 = vmul.f32 %v271, %v488
    %v490 = vadd.f32 %v487, %v489
    %v491 = vstv %s161
    %v492 = vmul.f32 %v279, %v491
    %v493 = vadd.f32 %v490, %v492
    %v494 = vstv %s171
    %v495 = vmul.f32 %v287, %v494
    %v496 = vadd.f32 %v493, %v495
    %v497 = vstv %s181
    %v498 = vmul.f32 %v295, %v497
    %v499 = vadd.f32 %v496, %v498
    %v500 = vstv %s191
    %v501 = vmul.f32 %v303, %v500
    %v502 = vadd.f32 %v499, %v501
    %v503 = vstv %s201
    %v504 = vmul.f32 %v311, %v503
    %v505 = vadd.f32 %v502, %v504
    %v506 = vstv %s211
    %v507 = vmul.f32 %v319, %v506
    %v508 = vadd.f32 %v505, %v507
    %v509 = vstv %s221
    %v510 = vadd.f32 %v508, %v509
    %v511 = vmax.f32 %v510, 0.0
    %v512 = vstv %s122
    %v513 = vmul.f32 %v247, %v512
    %v514 = vstv %s132
    %v515 = vmul.f32 %v255, %v514
    %v516 = vadd.f32 %v513, %v515
    %v517 = vstv %s142
    %v518 = vmul.f32 %v263, %v517
    %v519 = vadd.f32 %v516, %v518
    %v520 = vstv %s152
    %v521 = vmul.f32 %v271, %v520
    %v522 = vadd.f32 %v519, %v521
    %v523 = vstv %s162
    %v524 = vmul.f32 %v279, %v523
    %v525 = vadd.f32 %v522, %v524
    %v526 = vstv %s172
    %v527 = vmul.f32 %v287, %v526
    %v528 = vadd.f32 %v525, %v527
    %v529 = vstv %s182
    %v530 = vmul.f32 %v295, %v529
    %v531 = vadd.f32 %v528, %v530
    %v532 = vstv %s192
    %v533 = vmul.f32 %v303, %v532
    %v534 = vadd.f32 %v531, %v533
    %v535 = vstv %s202
    %v536 = vmul.f32 %v311, %v535
    %v537 = vadd.f32 %v534, %v536
    %v538 = vstv %s212
    %v539 = vmul.f32 %v319, %v538
    %v540 = vadd.f32 %v537, %v539
    %v541 = vstv %s222
    %v542 = vadd.f32 %v540, %v541
    %v543 = vmax.f32 %v542, 0.0
    %v544 = vstv %s123
    %v545 = vmul.f32 %v247, %v544
    %v546 = vstv %s133
    %v547 = vmul.f32 %v255, %v546
    %v548 = vadd.f32 %v545, %v547
    %v549 = vstv %s143
    %v550 = vmul.f32 %v263, %v549
    %v551 = vadd.f32 %v548, %v550
    %v552 = vstv %s153
    %v553 = vmul.f32 %v271, %v552
    %v554 = vadd.f32 %v551, %v553
    %v555 = vstv %s163
    %v556 = vmul.f32 %v279, %v555
    %v557 = vadd.f32 %v554, %v556
    %v558 = vstv %s173
    %v559 = vmul.f32 %v287, %v558
    %v560 = vadd.f32 %v557, %v559
    %v561 = vstv %s183
    %v562 = vmul.f32 %v295, %v561
    %v563 = vadd.f32 %v560, %v562
    %v564 = vstv %s193
    %v565 = vmul.f32 %v303, %v564
    %v566 = vadd.f32 %v563, %v565
    %v567 = vstv %s203
    %v568 = vmul.f32 %v311, %v567
    %v569 = vadd.f32 %v566, %v568
    %v570 = vstv %s213
    %v571 = vmul.f32 %v319, %v570
    %v572 = vadd.f32 %v569, %v571
    %v573 = vstv %s223
    %v574 = vadd.f32 %v572, %v573
    %v575 = vmax.f32 %v574, 0.0
    %v576 = vstv %s124
    %v577 = vmul.f32 %v247, %v576
    %v578 = vstv %s134
    %v579 = vmul.f32 %v255, %v578
    %v580 = vadd.f32 %v577, %v579
    %v581 = vstv %s144
    %v582 = vmul.f32 %v263, %v581
    %v583 = vadd.f32 %v580, %v582
    %v584 = vstv %s154
    %v585 = vmul.f32 %v271, %v584
    %v586 = vadd.f32 %v583, %v585
    %v587 = vstv %s164
    %v588 = vmul.f32 %v279, %v587
    %v589 = vadd.f32 %v586, %v588
    %v590 = vstv %s174
    %v591 = vmul.f32 %v287, %v590
    %v592 = vadd.f32 %v589, %v591
    %v593 = vstv %s184
    %v594 = vmul.f32 %v295, %v593
    %v595 = vadd.f32 %v592, %v594
    %v596 = vstv %s194
    %v597 = vmul.f32 %v303, %v596
    %v598 = vadd.f32 %v595, %v597
    %v599 = vstv %s204
    %v600 = vmul.f32 %v311, %v599
    %v601 = vadd.f32 %v598, %v600
    %v602 = vstv %s214
    %v603 = vmul.f32 %v319, %v602
    %v604 = vadd.f32 %v601, %v603
    %v605 = vstv %s224
    %v606 = vadd.f32 %v604, %v605
    %v607 = vmax.f32 %v606, 0.0
    %v608 = vstv %s125
    %v609 = vmul.f32 %v247, %v608
    %v610 = vstv %s135
    %v611 = vmul.f32 %v255, %v610
    %v612 = vadd.f32 %v609, %v611
    %v613 = vstv %s145
    %v614 = vmul.f32 %v263, %v613
    %v615 = vadd.f32 %v612, %v614
    %v616 = vstv %s155
    %v617 = vmul.f32 %v271, %v616
    %v618 = vadd.f32 %v615, %v617
    %v619 = vstv %s165
    %v620 = vmul.f32 %v279, %v619
    %v621 = vadd.f32 %v618, %v620
    %v622 = vstv %s175
    %v623 = vmul.f32 %v287, %v622
    %v624 = vadd.f32 %v621, %v623
    %v625 = vstv %s185
    %v626 = vmul.f32 %v295, %v625
    %v627 = vadd.f32 %v624, %v626
    %v628 = vstv %s195
    %v629 = vmul.f32 %v303, %v628
    %v630 = vadd.f32 %v627, %v629
    %v631 = vstv %s205
    %v632 = vmul.f32 %v311, %v631
    %v633 = vadd.f32 %v630, %v632
    %v634 = vstv %s215
    %v635 = vmul.f32 %v319, %v634
    %v636 = vadd.f32 %v633, %v635
    %v637 = vstv %s225
    %v638 = vadd.f32 %v636, %v637
    %v639 = vmax.f32 %v638, 0.0
    %v640 = vstv %s226
    %v641 = vmul.f32 %v351, %v640
    %v642 = vstv %s227
    %v643 = vmul.f32 %v383, %v642
    %v644 = vadd.f32 %v641, %v643
    %v645 = vstv %s228
    %v646 = vmul.f32 %v415, %v645
    %v647 = vadd.f32 %v644, %v646
    %v648 = vstv %s229
    %v649 = vmul.f32 %v447, %v648
    %v650 = vadd.f32 %v647, %v649
    %v651 = vstv %s230
    %v652 = vmul.f32 %v479, %v651
    %v653 = vadd.f32 %v650, %v652
    %v654 = vstv %s231
    %v655 = vmul.f32 %v511, %v654
    %v656 = vadd.f32 %v653, %v655
    %v657 = vstv %s232
    %v658 = vmul.f32 %v543, %v657
    %v659 = vadd.f32 %v656, %v658
    %v660 = vstv %s233
    %v661 = vmul.f32 %v575, %v660
    %v662 = vadd.f32 %v659, %v661
    %v663 = vstv %s234
    %v664 = vmul.f32 %v607, %v663
    %v665 = vadd.f32 %v662, %v664
    %v666 = vstv %s235
    %v667 = vmul.f32 %v639, %v666
    %v668 = vadd.f32 %v665, %v667
    %v669 = vstv %s236
    %v670 = vadd.f32 %v668, %v669
    %671 = vst [vmem:[%s7] sm:$0xff] %v670
    // Predicated region
    $region50: #{_forward_impl.1} parent=1 // pred_check
      _
    $region51: #{_forward_impl.1} parent=1 // pred_check_branch
      %673 = sbr.rel (0) target = $region53
    $region52: #{_forward_impl.1} parent=1 // pred_region
      _
    $region53: #{_forward_impl.1} parent=1 // pred_fallthru
      _
    // Predicated region
    $region54: #{_forward_impl.1} parent=1 // pred_check
      _
    $region55: #{_forward_impl.1} parent=1 // pred_check_branch
      %675 = sbr.rel (0) target = $region57
    $region56: #{_forward_impl.1} parent=1 // pred_region
      _
    $region57: #{_forward_impl.1} parent=1 // pred_fallthru
      _
    %676 = vsyncpa [#allocation4], 1
    %677 = vsyncpa [#allocation6], 1
    %678 = vsyncpa [#allocation9], 1

</llo_original>
